<compile_context>
chip_gen: v5e
topology: v5e:2x2
jax: 0.10.0
libtpu: 0.0.40
codegen_flags: <defaults>
</compile_context>

<pallas_src>
import math

import jax
import jax.numpy as jnp
from jax.experimental import pallas as pl
from jax.experimental.pallas import tpu as pltpu

NEG_SLOPE = 0.01
LANE = 128


def _leaky(x):
    return jnp.where(x > 0, x, NEG_SLOPE * x)


def _round_up(x, m):
    return ((x + m - 1) // m) * m


def _mm(a, w):
    # bf16 operands on the MXU, f32 accumulation.
    return jnp.dot(a.astype(jnp.bfloat16), w, preferred_element_type=jnp.float32)


# ----------------------------------------------------------------------------
# Kernel
# ----------------------------------------------------------------------------
def prediction_kernel(
    # inputs
    x1_ref, x2_ref,
    enc_w0, enc_b0, enc_w1, enc_b1, enc_wo, enc_bo,
    emb_ref, emb_t_ref, emb_sq_ref,
    pw0a, pw0b, pb0, pw1, pb1, pw2, pb2, pw3, pb3, pwo, pbo,
    # outputs
    z1_out, z2_out, packed_out,
):
    f32 = jnp.float32
    tb = x1_ref.shape[0]

    # ---- stack both players along the batch axis: one pass through the net --
    x = jnp.concatenate([x1_ref[...], x2_ref[...]], axis=0)          # (2tb, IN)

    # ---- category encoder ---------------------------------------------------
    h = _leaky(_mm(x, enc_w0[...]) + enc_b0[...])
    h = _leaky(_mm(h, enc_w1[...]) + enc_b1[...])
    z = _mm(h, enc_wo[...]) + enc_bo[...]                            # (2tb, H)

    # ---- vector quantization ------------------------------------------------
    # |z|^2 is a per-row constant: dropping it leaves argmin and the exact
    # tie-break mask unchanged.
    d = emb_sq_ref[...] - 2.0 * _mm(z, emb_t_ref[...])               # (2tb, E)
    num_emb = d.shape[-1]
    dmin = jnp.min(d, axis=-1, keepdims=True)
    col = jax.lax.broadcasted_iota(jnp.int32, d.shape, 1)
    # first index attaining the minimum (matches torch.argmin tie-breaking)
    k = jnp.min(jnp.where(d == dmin, col, num_emb), axis=-1, keepdims=True)
    onehot = (col == k).astype(f32)                                  # (2tb, E)
    # codebook gather as one-hot matmul (products are exactly 0 or the value)
    dec = _mm(onehot, emb_ref[...])                                  # (2tb, H)

    # ---- residual win-value predictor, one stacked pass ---------------------
    # rows [:tb]  -> predict(dec1, dec2);  rows [tb:] -> predict(dec2, dec1)
    a_side = dec
    b_side = jnp.concatenate([dec[tb:], dec[:tb]], axis=0)           # halves swapped
    h = _leaky(_mm(a_side, pw0a[...]) + _mm(b_side, pw0b[...]) + pb0[...])
    h = _leaky(_mm(h, pw1[...]) + pb1[...])
    h = _leaky(_mm(h, pw2[...]) + pb2[...])
    h = _leaky(_mm(h, pw3[...]) + pb3[...])
    vboth = jnp.tanh(_mm(h, pwo[...]) + pbo[...])                    # (2tb, 1)
    v = (vboth[:tb] - vboth[tb:]) * 0.5                              # (tb, 1)

    # ---- outputs -------------------------------------------------------------
    z1_out[...] = z[:tb]
    z2_out[...] = z[tb:]

    # lane-dense packed slab: col0 = v, col1 = k1, col2 = k2 (small ints, exact
    # in f32), remaining lanes zero.
    k1f = k[:tb].astype(f32)
    k2f = k[tb:].astype(f32)
    lane = jax.lax.broadcasted_iota(jnp.int32, (tb, packed_out.shape[1]), 1)
    packed_out[...] = jnp.where(
        lane == 0, v,
        jnp.where(lane == 1, k1f,
                  jnp.where(lane == 2, k2f, 0.0)))


# ----------------------------------------------------------------------------
# Parameters
# ----------------------------------------------------------------------------
def make_params(key, input_dim, hidden_dim, emb_count, emb_dim):
    """Deterministic synthetic parameters (xavier-uniform / trunc-normal)."""
    ks = list(jax.random.split(key, 16))

    def xavier(k, fan_in, fan_out):
        limit = math.sqrt(6.0 / (fan_in + fan_out))
        # stored as (in, out) — already "transposed" vs torch (out, in)
        return jax.random.uniform(k, (fan_in, fan_out), jnp.float32, -limit, limit)

    p = {}
    p["enc_w0"] = xavier(ks[0], input_dim, hidden_dim)
    p["enc_b0"] = jnp.zeros((1, hidden_dim), jnp.float32)
    p["enc_w1"] = xavier(ks[1], hidden_dim, hidden_dim)
    p["enc_b1"] = jnp.zeros((1, hidden_dim), jnp.float32)
    p["enc_wo"] = xavier(ks[2], hidden_dim, hidden_dim)
    p["enc_bo"] = jnp.zeros((1, hidden_dim), jnp.float32)

    pw0 = xavier(ks[3], 2 * hidden_dim, hidden_dim)
    p["pw0a"] = pw0[:hidden_dim, :]
    p["pw0b"] = pw0[hidden_dim:, :]
    p["pb0"] = jnp.zeros((1, hidden_dim), jnp.float32)
    p["pw1"] = xavier(ks[4], hidden_dim, hidden_dim)
    p["pb1"] = jnp.zeros((1, hidden_dim), jnp.float32)
    p["pw2"] = xavier(ks[5], hidden_dim, hidden_dim)
    p["pb2"] = jnp.zeros((1, hidden_dim), jnp.float32)
    p["pw3"] = xavier(ks[6], hidden_dim, hidden_dim)
    p["pb3"] = jnp.zeros((1, hidden_dim), jnp.float32)
    p["pwo"] = xavier(ks[7], hidden_dim, 1)
    p["pbo"] = jnp.zeros((1, 1), jnp.float32)

    p["emb"] = 0.02 * jax.random.truncated_normal(
        ks[8], -2.0, 2.0, (emb_count, emb_dim), jnp.float32)
    return p


def prepare_params(p):
    """Kernel-ready params: bf16 weights, pre-transposed codebook, |e|^2 row."""
    bf16 = jnp.bfloat16
    prep = {}
    for name in ("enc_w0", "enc_w1", "enc_wo",
                 "pw0a", "pw0b", "pw1", "pw2", "pw3", "pwo"):
        prep[name] = p[name].astype(bf16)
    for name in ("enc_b0", "enc_b1", "enc_bo",
                 "pb0", "pb1", "pb2", "pb3", "pbo"):
        prep[name] = p[name]                                   # f32 biases
    emb = p["emb"]
    prep["emb_bf16"] = emb.astype(bf16)                        # (E, H) decode
    prep["emb_t"] = emb.astype(bf16).T                         # (H, E) distance
    prep["emb_sq"] = jnp.sum(emb * emb, axis=-1, keepdims=True).T  # (1, E) f32
    return prep


# ----------------------------------------------------------------------------
# Wrapper
# ----------------------------------------------------------------------------
def prediction_model_forward(x1, x2, params, *, tile_b=None):
    B, in_dim = x1.shape
    H = params["enc_w0"].shape[1]

    prep = prepare_params(params)

    if tile_b is None:
        # biggest sublane-aligned tile up to 256 rows (MXU fill vs VMEM budget)
        tile_b = min(256, _round_up(B, 8))
    tile_b = _round_up(tile_b, 8)
    Bp = _round_up(B, tile_b)
    if Bp != B:
        pad = ((0, Bp - B), (0, 0))
        x1p = jnp.pad(x1, pad)
        x2p = jnp.pad(x2, pad)
    else:
        x1p, x2p = x1, x2

    weight_names = [
        "enc_w0", "enc_b0", "enc_w1", "enc_b1", "enc_wo", "enc_bo",
        "emb_bf16", "emb_t", "emb_sq",
        "pw0a", "pw0b", "pb0", "pw1", "pb1", "pw2", "pb2", "pw3", "pb3",
        "pwo", "pbo",
    ]
    weights = [prep[n] for n in weight_names]

    grid = (Bp // tile_b,)

    def row_spec(width):
        return pl.BlockSpec((tile_b, width), lambda i: (i, 0))

    def resident_spec(arr):
        nd = arr.ndim
        return pl.BlockSpec(arr.shape, lambda i, _nd=nd: (0,) * _nd)

    in_specs = ([row_spec(in_dim), row_spec(in_dim)]
                + [resident_spec(w) for w in weights])
    out_specs = (row_spec(H), row_spec(H), row_spec(LANE))
    out_shape = (
        jax.ShapeDtypeStruct((Bp, H), jnp.float32),    # z1
        jax.ShapeDtypeStruct((Bp, H), jnp.float32),    # z2
        jax.ShapeDtypeStruct((Bp, LANE), jnp.float32), # packed [v | k1 | k2 | 0...]
    )

    z1, z2, packed = pl.pallas_call(
        prediction_kernel,
        out_shape=out_shape,
        grid=grid,
        in_specs=in_specs,
        out_specs=out_specs,
        compiler_params=pltpu.CompilerParams(
            dimension_semantics=("parallel",),
            vmem_limit_bytes=32 * 1024 * 1024),
    )(x1p, x2p, *weights)

    z1 = z1[:B]
    z2 = z2[:B]
    packed = packed[:B]
    v = packed[:, 0:1]
    k1 = packed[:, 1].astype(jnp.int32)
    k2 = packed[:, 2].astype(jnp.int32)
    # exact f32 codebook gather (== torch.index_select), done once in XLA
    dec1 = jnp.take(params["emb"], k1, axis=0)
    dec2 = jnp.take(params["emb"], k2, axis=0)
    return ((z1, dec1), (z2, dec2), k1, k2, v)


# ----------------------------------------------------------------------------
# Pure-JAX reference (mirrors the PyTorch forward; uses the same bf16 MXU
# casts as the kernel so results are directly comparable)
# ----------------------------------------------------------------------------
def reference_forward(x1, x2, params):
    prep = prepare_params(params)
    emb = params["emb"]

    def enc(x):
        h = _leaky(_mm(x, prep["enc_w0"]) + prep["enc_b0"])
        h = _leaky(_mm(h, prep["enc_w1"]) + prep["enc_b1"])
        return _mm(h, prep["enc_wo"]) + prep["enc_bo"]

    def vq(z):
        d = prep["emb_sq"] - 2.0 * _mm(z, prep["emb_t"])
        k = jnp.argmin(d, axis=-1)
        return k, emb[k]

    z1, z2 = enc(x1), enc(x2)
    k1, d1 = vq(z1)
    k2, d2 = vq(z2)

    def pred(a, b):
        h = _leaky(_mm(a, prep["pw0a"]) + _mm(b, prep["pw0b"]) + prep["pb0"])
        h = _leaky(_mm(h, prep["pw1"]) + prep["pb1"])
        h = _leaky(_mm(h, prep["pw2"]) + prep["pb2"])
        h = _leaky(_mm(h, prep["pw3"]) + prep["pb3"])
        return jnp.tanh(_mm(h, prep["pwo"]) + prep["pbo"])

    return z1, z2, d1, d2, k1, k2, (pred(d1, d2) - pred(d2, d1)) * 0.5


if __name__ == "__main__":
    B, IN_DIM, HID, EMB_N = 16, 16, 32, 8

    key = jax.random.PRNGKey(0)
    k_p, k_x1, k_x2 = jax.random.split(key, 3)
    params = make_params(k_p, IN_DIM, HID, EMB_N, HID)
    x1 = jax.random.normal(k_x1, (B, IN_DIM), jnp.float32)
    x2 = jax.random.normal(k_x2, (B, IN_DIM), jnp.float32)

    # tile_b=8 -> grid of 2 steps: exercises batch pipelining + resident weights
    (z1, dec1), (z2, dec2), k1, k2, v = jax.block_until_ready(
        prediction_model_forward(x1, x2, params, tile_b=8))

    rz1, rz2, rd1, rd2, rk1, rk2, rv = reference_forward(x1, x2, params)
    assert jnp.allclose(z1, rz1, atol=1e-4, rtol=1e-4)
    assert jnp.allclose(z2, rz2, atol=1e-4, rtol=1e-4)
    assert jnp.array_equal(k1, rk1) and jnp.array_equal(k2, rk2)
    assert jnp.allclose(dec1, rd1, atol=1e-6) and jnp.allclose(dec2, rd2, atol=1e-6)
    assert jnp.allclose(v, rv, atol=5e-3)

    print("KERNEL_OK")
</pallas_src>

<mosaic_0001>
module attributes {stable_mosaic.version = 11 : i64} {
  func.func @prediction_kernel(%arg0: i32, %arg1: memref<8x16xf32, #tpu.memory_space<vmem>>, %arg2: memref<8x16xf32, #tpu.memory_space<vmem>>, %arg3: memref<16x32xbf16, #tpu.memory_space<vmem>>, %arg4: memref<1x32xf32, #tpu.memory_space<vmem>>, %arg5: memref<32x32xbf16, #tpu.memory_space<vmem>>, %arg6: memref<1x32xf32, #tpu.memory_space<vmem>>, %arg7: memref<32x32xbf16, #tpu.memory_space<vmem>>, %arg8: memref<1x32xf32, #tpu.memory_space<vmem>>, %arg9: memref<8x32xbf16, #tpu.memory_space<vmem>>, %arg10: memref<32x8xbf16, #tpu.memory_space<vmem>>, %arg11: memref<1x8xf32, #tpu.memory_space<vmem>>, %arg12: memref<32x32xbf16, #tpu.memory_space<vmem>>, %arg13: memref<32x32xbf16, #tpu.memory_space<vmem>>, %arg14: memref<1x32xf32, #tpu.memory_space<vmem>>, %arg15: memref<32x32xbf16, #tpu.memory_space<vmem>>, %arg16: memref<1x32xf32, #tpu.memory_space<vmem>>, %arg17: memref<32x32xbf16, #tpu.memory_space<vmem>>, %arg18: memref<1x32xf32, #tpu.memory_space<vmem>>, %arg19: memref<32x32xbf16, #tpu.memory_space<vmem>>, %arg20: memref<1x32xf32, #tpu.memory_space<vmem>>, %arg21: memref<32x1xbf16, #tpu.memory_space<vmem>>, %arg22: memref<1x1xf32, #tpu.memory_space<vmem>>, %arg23: memref<8x32xf32, #tpu.memory_space<vmem>>, %arg24: memref<8x32xf32, #tpu.memory_space<vmem>>, %arg25: memref<8x128xf32, #tpu.memory_space<vmem>>) attributes {dimension_semantics = [#tpu.dimension_semantics<parallel>], iteration_bounds = array<i64: 2>, scalar_prefetch = 0 : i64, scratch_operands = 0 : i64, tpu.core_type = #tpu.core_type<tc>, window_params = [{transform_indices = @transform_0, window_bounds = array<i64: 8, 16>}, {transform_indices = @transform_1, window_bounds = array<i64: 8, 16>}, {pipeline_mode = #tpu.pipeline_mode<synchronous>, transform_indices = @transform_2, window_bounds = array<i64: 16, 32>}, {pipeline_mode = #tpu.pipeline_mode<synchronous>, transform_indices = @transform_3, window_bounds = array<i64: 1, 32>}, {pipeline_mode = #tpu.pipeline_mode<synchronous>, transform_indices = @transform_4, window_bounds = array<i64: 32, 32>}, {pipeline_mode = #tpu.pipeline_mode<synchronous>, transform_indices = @transform_5, window_bounds = array<i64: 1, 32>}, {pipeline_mode = #tpu.pipeline_mode<synchronous>, transform_indices = @transform_6, window_bounds = array<i64: 32, 32>}, {pipeline_mode = #tpu.pipeline_mode<synchronous>, transform_indices = @transform_7, window_bounds = array<i64: 1, 32>}, {pipeline_mode = #tpu.pipeline_mode<synchronous>, transform_indices = @transform_8, window_bounds = array<i64: 8, 32>}, {pipeline_mode = #tpu.pipeline_mode<synchronous>, transform_indices = @transform_9, window_bounds = array<i64: 32, 8>}, {pipeline_mode = #tpu.pipeline_mode<synchronous>, transform_indices = @transform_10, window_bounds = array<i64: 1, 8>}, {pipeline_mode = #tpu.pipeline_mode<synchronous>, transform_indices = @transform_11, window_bounds = array<i64: 32, 32>}, {pipeline_mode = #tpu.pipeline_mode<synchronous>, transform_indices = @transform_12, window_bounds = array<i64: 32, 32>}, {pipeline_mode = #tpu.pipeline_mode<synchronous>, transform_indices = @transform_13, window_bounds = array<i64: 1, 32>}, {pipeline_mode = #tpu.pipeline_mode<synchronous>, transform_indices = @transform_14, window_bounds = array<i64: 32, 32>}, {pipeline_mode = #tpu.pipeline_mode<synchronous>, transform_indices = @transform_15, window_bounds = array<i64: 1, 32>}, {pipeline_mode = #tpu.pipeline_mode<synchronous>, transform_indices = @transform_16, window_bounds = array<i64: 32, 32>}, {pipeline_mode = #tpu.pipeline_mode<synchronous>, transform_indices = @transform_17, window_bounds = array<i64: 1, 32>}, {pipeline_mode = #tpu.pipeline_mode<synchronous>, transform_indices = @transform_18, window_bounds = array<i64: 32, 32>}, {pipeline_mode = #tpu.pipeline_mode<synchronous>, transform_indices = @transform_19, window_bounds = array<i64: 1, 32>}, {pipeline_mode = #tpu.pipeline_mode<synchronous>, transform_indices = @transform_20, window_bounds = array<i64: 32, 1>}, {pipeline_mode = #tpu.pipeline_mode<synchronous>, transform_indices = @transform_21, window_bounds = array<i64: 1, 1>}, {transform_indices = @transform_22, window_bounds = array<i64: 8, 32>}, {transform_indices = @transform_23, window_bounds = array<i64: 8, 32>}, {transform_indices = @transform_24, window_bounds = array<i64: 8, 128>}]} {
    %c0 = arith.constant 0 : index
    %c0_0 = arith.constant 0 : index
    %0 = vector.load %arg1[%c0, %c0_0] : memref<8x16xf32, #tpu.memory_space<vmem>>, vector<8x16xf32>
    %c0_1 = arith.constant 0 : index
    %c0_2 = arith.constant 0 : index
    %1 = vector.load %arg2[%c0_1, %c0_2] : memref<8x16xf32, #tpu.memory_space<vmem>>, vector<8x16xf32>
    %2 = tpu.concatenate %0, %1 in 0 : vector<8x16xf32>, vector<8x16xf32> -> vector<16x16xf32>
    %c0_3 = arith.constant 0 : index
    %c0_4 = arith.constant 0 : index
    %3 = vector.load %arg3[%c0_3, %c0_4] : memref<16x32xbf16, #tpu.memory_space<vmem>>, vector<16x32xbf16>
    %4 = arith.truncf %2 : vector<16x16xf32> to vector<16x16xbf16>
    %cst = arith.constant dense<0.000000e+00> : vector<16x32xf32>
    %5 = tpu.matmul %4, %3, %cst {dimension_numbers = #tpu.dot_dimension_numbers<[1], [0], [0], [1], [0, 0, 1, 1], [], []>} : vector<16x16xbf16>, vector<16x32xbf16>, vector<16x32xf32> -> vector<16x32xf32>
    %c0_5 = arith.constant 0 : index
    %c0_6 = arith.constant 0 : index
    %6 = vector.load %arg4[%c0_5, %c0_6] : memref<1x32xf32, #tpu.memory_space<vmem>>, vector<1x32xf32>
    %7 = vector.broadcast %6 : vector<1x32xf32> to vector<16x32xf32>
    %8 = arith.addf %5, %7 : vector<16x32xf32>
    %cst_7 = arith.constant 0.000000e+00 : f32
    %9 = vector.broadcast %cst_7 : f32 to vector<16x32xf32>
    %10 = arith.cmpf ogt, %8, %9 : vector<16x32xf32>
    %cst_8 = arith.constant 0.00999999977 : f32
    %11 = vector.broadcast %cst_8 : f32 to vector<16x32xf32>
    %12 = arith.mulf %11, %8 : vector<16x32xf32>
    %13 = arith.select %10, %8, %12 : vector<16x32xi1>, vector<16x32xf32>
    %c0_9 = arith.constant 0 : index
    %c0_10 = arith.constant 0 : index
    %14 = vector.load %arg5[%c0_9, %c0_10] : memref<32x32xbf16, #tpu.memory_space<vmem>>, vector<32x32xbf16>
    %15 = arith.truncf %13 : vector<16x32xf32> to vector<16x32xbf16>
    %cst_11 = arith.constant dense<0.000000e+00> : vector<16x32xf32>
    %16 = tpu.matmul %15, %14, %cst_11 {dimension_numbers = #tpu.dot_dimension_numbers<[1], [0], [0], [1], [0, 0, 1, 1], [], []>} : vector<16x32xbf16>, vector<32x32xbf16>, vector<16x32xf32> -> vector<16x32xf32>
    %c0_12 = arith.constant 0 : index
    %c0_13 = arith.constant 0 : index
    %17 = vector.load %arg6[%c0_12, %c0_13] : memref<1x32xf32, #tpu.memory_space<vmem>>, vector<1x32xf32>
    %18 = vector.broadcast %17 : vector<1x32xf32> to vector<16x32xf32>
    %19 = arith.addf %16, %18 : vector<16x32xf32>
    %cst_14 = arith.constant 0.000000e+00 : f32
    %20 = vector.broadcast %cst_14 : f32 to vector<16x32xf32>
    %21 = arith.cmpf ogt, %19, %20 : vector<16x32xf32>
    %cst_15 = arith.constant 0.00999999977 : f32
    %22 = vector.broadcast %cst_15 : f32 to vector<16x32xf32>
    %23 = arith.mulf %22, %19 : vector<16x32xf32>
    %24 = arith.select %21, %19, %23 : vector<16x32xi1>, vector<16x32xf32>
    %c0_16 = arith.constant 0 : index
    %c0_17 = arith.constant 0 : index
    %25 = vector.load %arg7[%c0_16, %c0_17] : memref<32x32xbf16, #tpu.memory_space<vmem>>, vector<32x32xbf16>
    %26 = arith.truncf %24 : vector<16x32xf32> to vector<16x32xbf16>
    %cst_18 = arith.constant dense<0.000000e+00> : vector<16x32xf32>
    %27 = tpu.matmul %26, %25, %cst_18 {dimension_numbers = #tpu.dot_dimension_numbers<[1], [0], [0], [1], [0, 0, 1, 1], [], []>} : vector<16x32xbf16>, vector<32x32xbf16>, vector<16x32xf32> -> vector<16x32xf32>
    %c0_19 = arith.constant 0 : index
    %c0_20 = arith.constant 0 : index
    %28 = vector.load %arg8[%c0_19, %c0_20] : memref<1x32xf32, #tpu.memory_space<vmem>>, vector<1x32xf32>
    %29 = vector.broadcast %28 : vector<1x32xf32> to vector<16x32xf32>
    %30 = arith.addf %27, %29 : vector<16x32xf32>
    %c0_21 = arith.constant 0 : index
    %c0_22 = arith.constant 0 : index
    %31 = vector.load %arg11[%c0_21, %c0_22] : memref<1x8xf32, #tpu.memory_space<vmem>>, vector<1x8xf32>
    %c0_23 = arith.constant 0 : index
    %c0_24 = arith.constant 0 : index
    %32 = vector.load %arg10[%c0_23, %c0_24] : memref<32x8xbf16, #tpu.memory_space<vmem>>, vector<32x8xbf16>
    %33 = arith.truncf %30 : vector<16x32xf32> to vector<16x32xbf16>
    %cst_25 = arith.constant dense<0.000000e+00> : vector<16x8xf32>
    %34 = tpu.matmul %33, %32, %cst_25 {dimension_numbers = #tpu.dot_dimension_numbers<[1], [0], [0], [1], [0, 0, 1, 1], [], []>} : vector<16x32xbf16>, vector<32x8xbf16>, vector<16x8xf32> -> vector<16x8xf32>
    %cst_26 = arith.constant 2.000000e+00 : f32
    %35 = vector.broadcast %cst_26 : f32 to vector<16x8xf32>
    %36 = arith.mulf %35, %34 : vector<16x8xf32>
    %37 = vector.broadcast %31 : vector<1x8xf32> to vector<16x8xf32>
    %38 = arith.subf %37, %36 : vector<16x8xf32>
    %cst_27 = arith.constant dense<0x7F800000> : vector<16xf32>
    %39 = vector.multi_reduction <minimumf>, %38, %cst_27 [1] : vector<16x8xf32> to vector<16xf32>
    %40 = vector.shape_cast %39 : vector<16xf32> to vector<16x1xf32>
    %41 = tpu.iota {dimensions = array<i32: 1>} : vector<16x8xi32>
    %42 = vector.broadcast %40 : vector<16x1xf32> to vector<16x8xf32>
    %43 = arith.cmpf oeq, %38, %42 : vector<16x8xf32>
    %c8_i32 = arith.constant 8 : i32
    %44 = vector.broadcast %c8_i32 : i32 to vector<16x8xi32>
    %45 = arith.select %43, %41, %44 : vector<16x8xi1>, vector<16x8xi32>
    %cst_28 = arith.constant dense<2147483647> : vector<16xi32>
    %46 = vector.multi_reduction <minsi>, %45, %cst_28 [1] : vector<16x8xi32> to vector<16xi32>
    %47 = vector.shape_cast %46 : vector<16xi32> to vector<16x1xi32>
    %48 = vector.broadcast %47 : vector<16x1xi32> to vector<16x8xi32>
    %49 = arith.cmpi eq, %41, %48 : vector<16x8xi32>
    %50 = arith.extui %49 : vector<16x8xi1> to vector<16x8xi32>
    %51 = arith.sitofp %50 : vector<16x8xi32> to vector<16x8xf32>
    %c0_29 = arith.constant 0 : index
    %c0_30 = arith.constant 0 : index
    %52 = vector.load %arg9[%c0_29, %c0_30] : memref<8x32xbf16, #tpu.memory_space<vmem>>, vector<8x32xbf16>
    %53 = arith.truncf %51 : vector<16x8xf32> to vector<16x8xbf16>
    %cst_31 = arith.constant dense<0.000000e+00> : vector<16x32xf32>
    %54 = tpu.matmul %53, %52, %cst_31 {dimension_numbers = #tpu.dot_dimension_numbers<[1], [0], [0], [1], [0, 0, 1, 1], [], []>} : vector<16x8xbf16>, vector<8x32xbf16>, vector<16x32xf32> -> vector<16x32xf32>
    %55 = vector.extract_strided_slice %54 {offsets = [8, 0], sizes = [8, 32], strides = [1, 1]} : vector<16x32xf32> to vector<8x32xf32>
    %56 = vector.extract_strided_slice %54 {offsets = [0, 0], sizes = [8, 32], strides = [1, 1]} : vector<16x32xf32> to vector<8x32xf32>
    %57 = tpu.concatenate %55, %56 in 0 : vector<8x32xf32>, vector<8x32xf32> -> vector<16x32xf32>
    %c0_32 = arith.constant 0 : index
    %c0_33 = arith.constant 0 : index
    %58 = vector.load %arg12[%c0_32, %c0_33] : memref<32x32xbf16, #tpu.memory_space<vmem>>, vector<32x32xbf16>
    %59 = arith.truncf %54 : vector<16x32xf32> to vector<16x32xbf16>
    %cst_34 = arith.constant dense<0.000000e+00> : vector<16x32xf32>
    %60 = tpu.matmul %59, %58, %cst_34 {dimension_numbers = #tpu.dot_dimension_numbers<[1], [0], [0], [1], [0, 0, 1, 1], [], []>} : vector<16x32xbf16>, vector<32x32xbf16>, vector<16x32xf32> -> vector<16x32xf32>
    %c0_35 = arith.constant 0 : index
    %c0_36 = arith.constant 0 : index
    %61 = vector.load %arg13[%c0_35, %c0_36] : memref<32x32xbf16, #tpu.memory_space<vmem>>, vector<32x32xbf16>
    %62 = arith.truncf %57 : vector<16x32xf32> to vector<16x32xbf16>
    %cst_37 = arith.constant dense<0.000000e+00> : vector<16x32xf32>
    %63 = tpu.matmul %62, %61, %cst_37 {dimension_numbers = #tpu.dot_dimension_numbers<[1], [0], [0], [1], [0, 0, 1, 1], [], []>} : vector<16x32xbf16>, vector<32x32xbf16>, vector<16x32xf32> -> vector<16x32xf32>
    %64 = arith.addf %60, %63 : vector<16x32xf32>
    %c0_38 = arith.constant 0 : index
    %c0_39 = arith.constant 0 : index
    %65 = vector.load %arg14[%c0_38, %c0_39] : memref<1x32xf32, #tpu.memory_space<vmem>>, vector<1x32xf32>
    %66 = vector.broadcast %65 : vector<1x32xf32> to vector<16x32xf32>
    %67 = arith.addf %64, %66 : vector<16x32xf32>
    %cst_40 = arith.constant 0.000000e+00 : f32
    %68 = vector.broadcast %cst_40 : f32 to vector<16x32xf32>
    %69 = arith.cmpf ogt, %67, %68 : vector<16x32xf32>
    %cst_41 = arith.constant 0.00999999977 : f32
    %70 = vector.broadcast %cst_41 : f32 to vector<16x32xf32>
    %71 = arith.mulf %70, %67 : vector<16x32xf32>
    %72 = arith.select %69, %67, %71 : vector<16x32xi1>, vector<16x32xf32>
    %c0_42 = arith.constant 0 : index
    %c0_43 = arith.constant 0 : index
    %73 = vector.load %arg15[%c0_42, %c0_43] : memref<32x32xbf16, #tpu.memory_space<vmem>>, vector<32x32xbf16>
    %74 = arith.truncf %72 : vector<16x32xf32> to vector<16x32xbf16>
    %cst_44 = arith.constant dense<0.000000e+00> : vector<16x32xf32>
    %75 = tpu.matmul %74, %73, %cst_44 {dimension_numbers = #tpu.dot_dimension_numbers<[1], [0], [0], [1], [0, 0, 1, 1], [], []>} : vector<16x32xbf16>, vector<32x32xbf16>, vector<16x32xf32> -> vector<16x32xf32>
    %c0_45 = arith.constant 0 : index
    %c0_46 = arith.constant 0 : index
    %76 = vector.load %arg16[%c0_45, %c0_46] : memref<1x32xf32, #tpu.memory_space<vmem>>, vector<1x32xf32>
    %77 = vector.broadcast %76 : vector<1x32xf32> to vector<16x32xf32>
    %78 = arith.addf %75, %77 : vector<16x32xf32>
    %cst_47 = arith.constant 0.000000e+00 : f32
    %79 = vector.broadcast %cst_47 : f32 to vector<16x32xf32>
    %80 = arith.cmpf ogt, %78, %79 : vector<16x32xf32>
    %cst_48 = arith.constant 0.00999999977 : f32
    %81 = vector.broadcast %cst_48 : f32 to vector<16x32xf32>
    %82 = arith.mulf %81, %78 : vector<16x32xf32>
    %83 = arith.select %80, %78, %82 : vector<16x32xi1>, vector<16x32xf32>
    %c0_49 = arith.constant 0 : index
    %c0_50 = arith.constant 0 : index
    %84 = vector.load %arg17[%c0_49, %c0_50] : memref<32x32xbf16, #tpu.memory_space<vmem>>, vector<32x32xbf16>
    %85 = arith.truncf %83 : vector<16x32xf32> to vector<16x32xbf16>
    %cst_51 = arith.constant dense<0.000000e+00> : vector<16x32xf32>
    %86 = tpu.matmul %85, %84, %cst_51 {dimension_numbers = #tpu.dot_dimension_numbers<[1], [0], [0], [1], [0, 0, 1, 1], [], []>} : vector<16x32xbf16>, vector<32x32xbf16>, vector<16x32xf32> -> vector<16x32xf32>
    %c0_52 = arith.constant 0 : index
    %c0_53 = arith.constant 0 : index
    %87 = vector.load %arg18[%c0_52, %c0_53] : memref<1x32xf32, #tpu.memory_space<vmem>>, vector<1x32xf32>
    %88 = vector.broadcast %87 : vector<1x32xf32> to vector<16x32xf32>
    %89 = arith.addf %86, %88 : vector<16x32xf32>
    %cst_54 = arith.constant 0.000000e+00 : f32
    %90 = vector.broadcast %cst_54 : f32 to vector<16x32xf32>
    %91 = arith.cmpf ogt, %89, %90 : vector<16x32xf32>
    %cst_55 = arith.constant 0.00999999977 : f32
    %92 = vector.broadcast %cst_55 : f32 to vector<16x32xf32>
    %93 = arith.mulf %92, %89 : vector<16x32xf32>
    %94 = arith.select %91, %89, %93 : vector<16x32xi1>, vector<16x32xf32>
    %c0_56 = arith.constant 0 : index
    %c0_57 = arith.constant 0 : index
    %95 = vector.load %arg19[%c0_56, %c0_57] : memref<32x32xbf16, #tpu.memory_space<vmem>>, vector<32x32xbf16>
    %96 = arith.truncf %94 : vector<16x32xf32> to vector<16x32xbf16>
    %cst_58 = arith.constant dense<0.000000e+00> : vector<16x32xf32>
    %97 = tpu.matmul %96, %95, %cst_58 {dimension_numbers = #tpu.dot_dimension_numbers<[1], [0], [0], [1], [0, 0, 1, 1], [], []>} : vector<16x32xbf16>, vector<32x32xbf16>, vector<16x32xf32> -> vector<16x32xf32>
    %c0_59 = arith.constant 0 : index
    %c0_60 = arith.constant 0 : index
    %98 = vector.load %arg20[%c0_59, %c0_60] : memref<1x32xf32, #tpu.memory_space<vmem>>, vector<1x32xf32>
    %99 = vector.broadcast %98 : vector<1x32xf32> to vector<16x32xf32>
    %100 = arith.addf %97, %99 : vector<16x32xf32>
    %cst_61 = arith.constant 0.000000e+00 : f32
    %101 = vector.broadcast %cst_61 : f32 to vector<16x32xf32>
    %102 = arith.cmpf ogt, %100, %101 : vector<16x32xf32>
    %cst_62 = arith.constant 0.00999999977 : f32
    %103 = vector.broadcast %cst_62 : f32 to vector<16x32xf32>
    %104 = arith.mulf %103, %100 : vector<16x32xf32>
    %105 = arith.select %102, %100, %104 : vector<16x32xi1>, vector<16x32xf32>
    %c0_63 = arith.constant 0 : index
    %c0_64 = arith.constant 0 : index
    %106 = vector.load %arg21[%c0_63, %c0_64] : memref<32x1xbf16, #tpu.memory_space<vmem>>, vector<32x1xbf16>
    %107 = arith.truncf %105 : vector<16x32xf32> to vector<16x32xbf16>
    %cst_65 = arith.constant dense<0.000000e+00> : vector<16x1xf32>
    %108 = tpu.matmul %107, %106, %cst_65 {dimension_numbers = #tpu.dot_dimension_numbers<[1], [0], [0], [1], [0, 0, 1, 1], [], []>} : vector<16x32xbf16>, vector<32x1xbf16>, vector<16x1xf32> -> vector<16x1xf32>
    %c0_66 = arith.constant 0 : index
    %c0_67 = arith.constant 0 : index
    %109 = vector.load %arg22[%c0_66, %c0_67] : memref<1x1xf32, #tpu.memory_space<vmem>>, vector<1x1xf32>
    %110 = vector.broadcast %109 : vector<1x1xf32> to vector<16x1xf32>
    %111 = arith.addf %108, %110 : vector<16x1xf32>
    %112 = math.tanh %111 : vector<16x1xf32>
    %113 = vector.extract_strided_slice %112 {offsets = [0, 0], sizes = [8, 1], strides = [1, 1]} : vector<16x1xf32> to vector<8x1xf32>
    %114 = vector.extract_strided_slice %112 {offsets = [8, 0], sizes = [8, 1], strides = [1, 1]} : vector<16x1xf32> to vector<8x1xf32>
    %115 = arith.subf %113, %114 : vector<8x1xf32>
    %cst_68 = arith.constant 5.000000e-01 : f32
    %116 = vector.broadcast %cst_68 : f32 to vector<8x1xf32>
    %117 = arith.mulf %115, %116 : vector<8x1xf32>
    %118 = vector.extract_strided_slice %30 {offsets = [0, 0], sizes = [8, 32], strides = [1, 1]} : vector<16x32xf32> to vector<8x32xf32>
    %c0_69 = arith.constant 0 : index
    %c0_70 = arith.constant 0 : index
    %119 = vector.load %arg23[%c0_69, %c0_70] : memref<8x32xf32, #tpu.memory_space<vmem>>, vector<8x32xf32>
    tpu.vector_store %arg23[%c0_69, %c0_70], %118 {strides = array<i32>} : memref<8x32xf32, #tpu.memory_space<vmem>>, vector<8x32xf32>,
    %120 = vector.extract_strided_slice %30 {offsets = [8, 0], sizes = [8, 32], strides = [1, 1]} : vector<16x32xf32> to vector<8x32xf32>
    %c0_71 = arith.constant 0 : index
    %c0_72 = arith.constant 0 : index
    %121 = vector.load %arg24[%c0_71, %c0_72] : memref<8x32xf32, #tpu.memory_space<vmem>>, vector<8x32xf32>
    tpu.vector_store %arg24[%c0_71, %c0_72], %120 {strides = array<i32>} : memref<8x32xf32, #tpu.memory_space<vmem>>, vector<8x32xf32>,
    %122 = vector.extract_strided_slice %47 {offsets = [0, 0], sizes = [8, 1], strides = [1, 1]} : vector<16x1xi32> to vector<8x1xi32>
    %123 = arith.sitofp %122 : vector<8x1xi32> to vector<8x1xf32>
    %124 = vector.extract_strided_slice %47 {offsets = [8, 0], sizes = [8, 1], strides = [1, 1]} : vector<16x1xi32> to vector<8x1xi32>
    %125 = arith.sitofp %124 : vector<8x1xi32> to vector<8x1xf32>
    %126 = tpu.iota {dimensions = array<i32: 1>} : vector<8x128xi32>
    %c0_i32 = arith.constant 0 : i32
    %127 = vector.broadcast %c0_i32 : i32 to vector<8x128xi32>
    %128 = arith.cmpi eq, %126, %127 : vector<8x128xi32>
    %c1_i32 = arith.constant 1 : i32
    %129 = vector.broadcast %c1_i32 : i32 to vector<8x128xi32>
    %130 = arith.cmpi eq, %126, %129 : vector<8x128xi32>
    %c2_i32 = arith.constant 2 : i32
    %131 = vector.broadcast %c2_i32 : i32 to vector<8x128xi32>
    %132 = arith.cmpi eq, %126, %131 : vector<8x128xi32>
    %cst_73 = arith.constant 0.000000e+00 : f32
    %133 = vector.shape_cast %125 : vector<8x1xf32> to vector<8x1xf32>
    %134 = vector.broadcast %133 : vector<8x1xf32> to vector<8x128xf32>
    %135 = vector.broadcast %cst_73 : f32 to vector<8x128xf32>
    %136 = arith.select %132, %134, %135 : vector<8x128xi1>, vector<8x128xf32>
    %137 = vector.shape_cast %123 : vector<8x1xf32> to vector<8x1xf32>
    %138 = vector.broadcast %137 : vector<8x1xf32> to vector<8x128xf32>
    %139 = arith.select %130, %138, %136 : vector<8x128xi1>, vector<8x128xf32>
    %140 = vector.shape_cast %117 : vector<8x1xf32> to vector<8x1xf32>
    %141 = vector.broadcast %140 : vector<8x1xf32> to vector<8x128xf32>
    %142 = arith.select %128, %141, %139 : vector<8x128xi1>, vector<8x128xf32>
    %c0_74 = arith.constant 0 : index
    %c0_75 = arith.constant 0 : index
    %143 = vector.load %arg25[%c0_74, %c0_75] : memref<8x128xf32, #tpu.memory_space<vmem>>, vector<8x128xf32>
    tpu.vector_store %arg25[%c0_74, %c0_75], %142 {strides = array<i32>} : memref<8x128xf32, #tpu.memory_space<vmem>>, vector<8x128xf32>,
    return
  }
  func.func @transform_0(%arg0: i32) -> (i32, i32) {
    %c0_i32 = arith.constant 0 : i32
    %c0_i32_0 = arith.constant 0 : i32
    return %arg0, %c0_i32 : i32, i32
  }
  func.func @transform_1(%arg0: i32) -> (i32, i32) {
    %c0_i32 = arith.constant 0 : i32
    %c0_i32_0 = arith.constant 0 : i32
    return %arg0, %c0_i32 : i32, i32
  }
  func.func @transform_2(%arg0: i32) -> (i32, i32) {
    %c0_i32 = arith.constant 0 : i32
    %c0_i32_0 = arith.constant 0 : i32
    %c0_i32_1 = arith.constant 0 : i32
    return %c0_i32, %c0_i32_0 : i32, i32
  }
  func.func @transform_3(%arg0: i32) -> (i32, i32) {
    %c0_i32 = arith.constant 0 : i32
    %c0_i32_0 = arith.constant 0 : i32
    %c0_i32_1 = arith.constant 0 : i32
    return %c0_i32, %c0_i32_0 : i32, i32
  }
  func.func @transform_4(%arg0: i32) -> (i32, i32) {
    %c0_i32 = arith.constant 0 : i32
    %c0_i32_0 = arith.constant 0 : i32
    %c0_i32_1 = arith.constant 0 : i32
    return %c0_i32, %c0_i32_0 : i32, i32
  }
  func.func @transform_5(%arg0: i32) -> (i32, i32) {
    %c0_i32 = arith.constant 0 : i32
    %c0_i32_0 = arith.constant 0 : i32
    %c0_i32_1 = arith.constant 0 : i32
    return %c0_i32, %c0_i32_0 : i32, i32
  }
  func.func @transform_6(%arg0: i32) -> (i32, i32) {
    %c0_i32 = arith.constant 0 : i32
    %c0_i32_0 = arith.constant 0 : i32
    %c0_i32_1 = arith.constant 0 : i32
    return %c0_i32, %c0_i32_0 : i32, i32
  }
  func.func @transform_7(%arg0: i32) -> (i32, i32) {
    %c0_i32 = arith.constant 0 : i32
    %c0_i32_0 = arith.constant 0 : i32
    %c0_i32_1 = arith.constant 0 : i32
    return %c0_i32, %c0_i32_0 : i32, i32
  }
  func.func @transform_8(%arg0: i32) -> (i32, i32) {
    %c0_i32 = arith.constant 0 : i32
    %c0_i32_0 = arith.constant 0 : i32
    %c0_i32_1 = arith.constant 0 : i32
    return %c0_i32, %c0_i32_0 : i32, i32
  }
  func.func @transform_9(%arg0: i32) -> (i32, i32) {
    %c0_i32 = arith.constant 0 : i32
    %c0_i32_0 = arith.constant 0 : i32
    %c0_i32_1 = arith.constant 0 : i32
    return %c0_i32, %c0_i32_0 : i32, i32
  }
  func.func @transform_10(%arg0: i32) -> (i32, i32) {
    %c0_i32 = arith.constant 0 : i32
    %c0_i32_0 = arith.constant 0 : i32
    %c0_i32_1 = arith.constant 0 : i32
    return %c0_i32, %c0_i32_0 : i32, i32
  }
  func.func @transform_11(%arg0: i32) -> (i32, i32) {
    %c0_i32 = arith.constant 0 : i32
    %c0_i32_0 = arith.constant 0 : i32
    %c0_i32_1 = arith.constant 0 : i32
    return %c0_i32, %c0_i32_0 : i32, i32
  }
  func.func @transform_12(%arg0: i32) -> (i32, i32) {
    %c0_i32 = arith.constant 0 : i32
    %c0_i32_0 = arith.constant 0 : i32
    %c0_i32_1 = arith.constant 0 : i32
    return %c0_i32, %c0_i32_0 : i32, i32
  }
  func.func @transform_13(%arg0: i32) -> (i32, i32) {
    %c0_i32 = arith.constant 0 : i32
    %c0_i32_0 = arith.constant 0 : i32
    %c0_i32_1 = arith.constant 0 : i32
    return %c0_i32, %c0_i32_0 : i32, i32
  }
  func.func @transform_14(%arg0: i32) -> (i32, i32) {
    %c0_i32 = arith.constant 0 : i32
    %c0_i32_0 = arith.constant 0 : i32
    %c0_i32_1 = arith.constant 0 : i32
    return %c0_i32, %c0_i32_0 : i32, i32
  }
  func.func @transform_15(%arg0: i32) -> (i32, i32) {
    %c0_i32 = arith.constant 0 : i32
    %c0_i32_0 = arith.constant 0 : i32
    %c0_i32_1 = arith.constant 0 : i32
    return %c0_i32, %c0_i32_0 : i32, i32
  }
  func.func @transform_16(%arg0: i32) -> (i32, i32) {
    %c0_i32 = arith.constant 0 : i32
    %c0_i32_0 = arith.constant 0 : i32
    %c0_i32_1 = arith.constant 0 : i32
    return %c0_i32, %c0_i32_0 : i32, i32
  }
  func.func @transform_17(%arg0: i32) -> (i32, i32) {
    %c0_i32 = arith.constant 0 : i32
    %c0_i32_0 = arith.constant 0 : i32
    %c0_i32_1 = arith.constant 0 : i32
    return %c0_i32, %c0_i32_0 : i32, i32
  }
  func.func @transform_18(%arg0: i32) -> (i32, i32) {
    %c0_i32 = arith.constant 0 : i32
    %c0_i32_0 = arith.constant 0 : i32
    %c0_i32_1 = arith.constant 0 : i32
    return %c0_i32, %c0_i32_0 : i32, i32
  }
  func.func @transform_19(%arg0: i32) -> (i32, i32) {
    %c0_i32 = arith.constant 0 : i32
    %c0_i32_0 = arith.constant 0 : i32
    %c0_i32_1 = arith.constant 0 : i32
    return %c0_i32, %c0_i32_0 : i32, i32
  }
  func.func @transform_20(%arg0: i32) -> (i32, i32) {
    %c0_i32 = arith.constant 0 : i32
    %c0_i32_0 = arith.constant 0 : i32
    %c0_i32_1 = arith.constant 0 : i32
    return %c0_i32, %c0_i32_0 : i32, i32
  }
  func.func @transform_21(%arg0: i32) -> (i32, i32) {
    %c0_i32 = arith.constant 0 : i32
    %c0_i32_0 = arith.constant 0 : i32
    %c0_i32_1 = arith.constant 0 : i32
    return %c0_i32, %c0_i32_0 : i32, i32
  }
  func.func @transform_22(%arg0: i32) -> (i32, i32) {
    %c0_i32 = arith.constant 0 : i32
    %c0_i32_0 = arith.constant 0 : i32
    return %arg0, %c0_i32 : i32, i32
  }
  func.func @transform_23(%arg0: i32) -> (i32, i32) {
    %c0_i32 = arith.constant 0 : i32
    %c0_i32_0 = arith.constant 0 : i32
    return %arg0, %c0_i32 : i32, i32
  }
  func.func @transform_24(%arg0: i32) -> (i32, i32) {
    %c0_i32 = arith.constant 0 : i32
    %c0_i32_0 = arith.constant 0 : i32
    return %arg0, %c0_i32 : i32, i32
  }
}

</mosaic_0001>

<llo_original>
// kernel: tpu_custom_call.1
$region0: #{tpu_custom_call.1}
  #allocation0 [shape = 'u32[]', space=smem, size = 0x4, offset = 0x4, fixed_abs, tag = 'smem constant byte address 0x4 - core index']
  #allocation1 [shape = 'u32[72,128]{1,0:T(1,128)}', space=vmem, size = 0x9000, scoped, tag = 'internal scratch']
  #allocation2 [shape = 'f32[1,1]{1,0:T(1,128)S(1)}', space=vmem, size = 0x200, scoped, tag = 'scoped memory for tpu_custom_call.1']
  %s0 = inlined_call_operand.vmem [shape: f32[16,16], index: 0, kind: input, shape index: {}]
  %s1 = inlined_call_operand.vmem [shape: f32[16,16], index: 1, kind: input, shape index: {}]
  %s2 = inlined_call_operand.hbm [shape: bf16[16,32], index: 2, kind: input, shape index: {}]
  %s3 = inlined_call_operand.vmem [shape: f32[1,32], index: 3, kind: input, shape index: {}]
  %s4 = inlined_call_operand.hbm [shape: bf16[32,32], index: 4, kind: input, shape index: {}]
  %s5 = inlined_call_operand.vmem [shape: f32[1,32], index: 5, kind: input, shape index: {}]
  %s6 = inlined_call_operand.hbm [shape: bf16[32,32], index: 6, kind: input, shape index: {}]
  %s7 = inlined_call_operand.vmem [shape: f32[1,32], index: 7, kind: input, shape index: {}]
  %s8 = inlined_call_operand.vmem [shape: bf16[8,32], index: 8, kind: input, shape index: {}]
  %s9 = inlined_call_operand.vmem [shape: bf16[32,8], index: 9, kind: input, shape index: {}]
  %s10 = inlined_call_operand.vmem [shape: f32[1,8], index: 10, kind: input, shape index: {}]
  %s11 = inlined_call_operand.hbm [shape: bf16[32,32], index: 11, kind: input, shape index: {}]
  %s12 = inlined_call_operand.hbm [shape: bf16[32,32], index: 12, kind: input, shape index: {}]
  %s13 = inlined_call_operand.vmem [shape: f32[1,32], index: 13, kind: input, shape index: {}]
  %s14 = inlined_call_operand.hbm [shape: bf16[32,32], index: 14, kind: input, shape index: {}]
  %s15 = inlined_call_operand.vmem [shape: f32[1,32], index: 15, kind: input, shape index: {}]
  %s16 = inlined_call_operand.hbm [shape: bf16[32,32], index: 16, kind: input, shape index: {}]
  %s17 = inlined_call_operand.vmem [shape: f32[1,32], index: 17, kind: input, shape index: {}]
  %s18 = inlined_call_operand.hbm [shape: bf16[32,32], index: 18, kind: input, shape index: {}]
  %s19 = inlined_call_operand.vmem [shape: f32[1,32], index: 19, kind: input, shape index: {}]
  %s20 = inlined_call_operand.vmem [shape: bf16[32,1], index: 20, kind: input, shape index: {}]
  %s21 = inlined_call_operand.<no memory space> [shape: f32[1,1], index: 21, kind: input, shape index: {}]
  %s22 = inlined_call_operand.hbm [shape: f32[16,32], index: 22, kind: output, shape index: {0}]
  %s23 = inlined_call_operand.hbm [shape: f32[16,32], index: 23, kind: output, shape index: {1}]
  %s24 = inlined_call_operand.hbm [shape: f32[16,128], index: 24, kind: output, shape index: {2}]
  %25 = xla_tuple %s22, %s23, %s24
  %s26 = sld [smem:[#allocation0]]
  $region169: #{tpu_custom_call.1} parent=0
    _
  %s28 = ssub.s32 1, %s26
  %s29 = scalar_select 0, %s28, %s26
  %v30 = vstv %s21
  %31 = vst [vmem:[#allocation2] sm:$0x1] %v30
  $region1: #{tpu_custom_call.1} parent=0
    #allocation3 [shape = 'u8[4096]{0}', space=vmem, size = 0x1000, scoped, tag = 'input window, operand 2, single buffered']
    #allocation4 [shape = 's32[2]{0}', space=sflag, size = 0x8, scoped, tag = 'scoped memory for tpu_custom_call.1']
    #allocation5 [shape = 's32[2]{0}', space=sflag, size = 0x8, scoped, tag = 'scoped memory for tpu_custom_call.1']
    #allocation6 [shape = 'u8[8192]{0}', space=vmem, size = 0x2000, scoped, tag = 'input window, operand 4, single buffered']
    #allocation7 [shape = 's32[1]{0}', space=sflag, size = 0x4, scoped, tag = 'scoped memory for tpu_custom_call.1']
    #allocation8 [shape = 'u8[8192]{0}', space=vmem, size = 0x2000, scoped, tag = 'input window, operand 6, single buffered']
    #allocation9 [shape = 'u8[8192]{0}', space=vmem, size = 0x2000, scoped, tag = 'input window, operand 11, single buffered']
    #allocation10 [shape = 's32[1]{0}', space=sflag, size = 0x4, scoped, tag = 'scoped memory for tpu_custom_call.1']
    #allocation11 [shape = 'u8[8192]{0}', space=vmem, size = 0x2000, scoped, tag = 'input window, operand 12, single buffered']
    #allocation12 [shape = 'u8[8192]{0}', space=vmem, size = 0x2000, scoped, tag = 'input window, operand 14, single buffered']
    #allocation13 [shape = 's32[1]{0}', space=sflag, size = 0x4, scoped, tag = 'scoped memory for tpu_custom_call.1']
    #allocation14 [shape = 'u8[8192]{0}', space=vmem, size = 0x2000, scoped, tag = 'input window, operand 16, single buffered']
    #allocation15 [shape = 'u8[8192]{0}', space=vmem, size = 0x2000, scoped, tag = 'input window, operand 18, single buffered']
    #allocation16 [shape = 's32[1]{0}', space=sflag, size = 0x4, scoped, tag = 'scoped memory for tpu_custom_call.1']
    #allocation17 [shape = 'u8[8192]{0}', space=vmem, size = 0x2000, scoped, tag = 'output window, operand 0']
    #allocation18 [shape = 'u8[8192]{0}', space=vmem, size = 0x2000, scoped, tag = 'output window, operand 1']
    #allocation19 [shape = 's32[2]{0}', space=sflag, size = 0x8, scoped, tag = 'scoped memory for tpu_custom_call.1']
    #allocation20 [shape = 'u8[8192]{0}', space=vmem, size = 0x2000, scoped, tag = 'output window, operand 2']
    %32 = vsyncpa [#allocation4], 0
    %33 = vsyncpa [#allocation7], 0
    %34 = vsyncpa [#allocation10], 0
    %35 = vsyncpa [#allocation13], 0
    %36 = vsyncpa [#allocation16], 0
    %37 = vsyncpa [#allocation5], 0
    %s38 = scalar_lea.sflag [#allocation5], 1
    %39 = vsyncpa %s38, 0
    %40 = vsyncpa [#allocation19], 0
    %s41 = scalar_lea.sflag [#allocation19], 1
    %42 = vsyncpa %s41, 0
    loop: start=0, step=1, limit=4
    $region2: #{tpu_custom_call.1} parent=1 // loop_pre_header
      _
    $region3: #{tpu_custom_call.1} parent=1 // loop_header
      %s44 = sphi 0, %s48
      %p45 = scmp.ge.s32.totalorder %s44, 4
      %s54 = sphi 0, %s56
      %s57 = sphi 0, %s54
      %s58 = sphi 0, %s57
      %s74 = sphi 0, %s58
      %s80 = sphi 0, %s82
      %s83 = sphi 0, %s80
      %s84 = sphi 0, %s83
      %s100 = sphi 0, %s84
      %s104 = sphi 0, %s104
      %s106 = sphi 0, %s104
      %s107 = sphi 0, %s106
      %s121 = sphi 0, %s107
      %s125 = sphi 0, %s125
      %s127 = sphi 0, %s125
      %s128 = sphi 0, %s127
      %s142 = sphi 0, %s128
      %s146 = sphi 0, %s146
      %s148 = sphi 0, %s146
      %s149 = sphi 0, %s148
      %s163 = sphi 0, %s149
      %s167 = sphi 0, %s167
      %s169 = sphi 0, %s167
      %s170 = sphi 0, %s169
      %s184 = sphi 0, %s170
      %s188 = sphi 0, %s188
      %s190 = sphi 0, %s188
      %s191 = sphi 0, %s190
      %s205 = sphi 0, %s191
      %s209 = sphi 0, %s209
      %s211 = sphi 0, %s209
      %s212 = sphi 0, %s211
      %s226 = sphi 0, %s212
      %s230 = sphi 0, %s230
      %s232 = sphi 0, %s230
      %s233 = sphi 0, %s232
      %s247 = sphi 0, %s233
      %s251 = sphi 0, %s251
      %s253 = sphi 0, %s251
      %s254 = sphi 0, %s253
      %s268 = sphi 0, %s254
      %s272 = sphi 0, %s272
      %s274 = sphi 0, %s272
      %s275 = sphi 0, %s274
      %s289 = sphi 0, %s275
      %s293 = sphi 0, %s293
      %s295 = sphi 0, %s293
      %s296 = sphi 0, %s295
      %s310 = sphi 0, %s296
      %s314 = sphi 0, %s314
      %s316 = sphi 0, %s314
      %s317 = sphi 0, %s316
      %s331 = sphi 0, %s317
      %s335 = sphi 0, %s335
      %s337 = sphi 0, %s335
      %s338 = sphi 0, %s337
      %s352 = sphi 0, %s338
      %s356 = sphi 0, %s356
      %s358 = sphi 0, %s356
      %s359 = sphi 0, %s358
      %s373 = sphi 0, %s359
      %s377 = sphi 0, %s377
      %s379 = sphi 0, %s377
      %s380 = sphi 0, %s379
      %s394 = sphi 0, %s380
      %s398 = sphi 0, %s398
      %s400 = sphi 0, %s398
      %s401 = sphi 0, %s400
      %s415 = sphi 0, %s401
      %s419 = sphi 0, %s419
      %s421 = sphi 0, %s419
      %s422 = sphi 0, %s421
      %s436 = sphi 0, %s422
      %s440 = sphi 0, %s440
      %s442 = sphi 0, %s440
      %s443 = sphi 0, %s442
      %s457 = sphi 0, %s443
      %s461 = sphi 0, %s461
      %s463 = sphi 0, %s461
      %s464 = sphi 0, %s463
      %s478 = sphi 0, %s464
      %s482 = sphi 0, %s482
      %s484 = sphi 0, %s482
      %s485 = sphi 0, %s484
      %s499 = sphi 0, %s485
      %s503 = sphi 0, %s503
      %s505 = sphi 0, %s503
      %s506 = sphi 0, %s505
      %s520 = sphi 0, %s506
      %s526 = sphi 0, %s528
      %s529 = sphi 0, %s526
      %s530 = sphi 0, %s529
      %s546 = sphi 0, %s530
      %s552 = sphi 0, %s554
      %s555 = sphi 0, %s552
      %s556 = sphi 0, %s555
      %s572 = sphi 0, %s556
      %s578 = sphi 0, %s580
      %s581 = sphi 0, %s578
      %s582 = sphi 0, %s581
      %s598 = sphi 0, %s582
    $region4: #{tpu_custom_call.1} parent=1 // loop_header_branch
      %47 = sbr.rel (%p45) target = $region8
    $region5: #{tpu_custom_call.1} parent=1 // loop_body
      %s49 = ssub.s32 %s44, 1
      %s50 = ssub.s32 %s44, 2
      %s51 = sadd.s32 %s44, 1
      %s52 = ssub.s32 %s44, %s51
      %p53 = scmp.eq.s32.totalorder %s52, 0
      %s55 = sadd.s32 %s54, 1
      %s56 = scalar_select %p53, %s54, %s55
      %p59 = pneg %p53
      %p60 = scmp.eq.s32.totalorder %s44, 1
      %p61 = por %p59, %p60
      %p62 = scmp.ne.s32.totalorder %s54, %s57
      %p63 = scmp.eq.s32.totalorder %s44, 0
      %p64 = por %p62, %p63
      %p65 = scmp.ne.s32.totalorder %s54, %s57
      %p66 = scmp.eq.s32.totalorder %s49, 1
      %p67 = por %p65, %p66
      %p68 = scmp.ne.s32.totalorder %s57, %s58
      %p69 = scmp.eq.s32.totalorder %s49, 0
      %p70 = por %p68, %p69
      %p71 = scmp.ne.s32.totalorder %s57, %s58
      %p72 = scmp.eq.s32.totalorder %s50, 1
      %p73 = por %p71, %p72
      %p75 = scmp.ne.s32.totalorder %s58, %s74
      %p76 = scmp.eq.s32.totalorder %s50, 0
      %p77 = por %p75, %p76
      %s78 = ssub.s32 %s44, %s51
      %p79 = scmp.eq.s32.totalorder %s78, 0
      %s81 = sadd.s32 %s80, 1
      %s82 = scalar_select %p79, %s80, %s81
      %p85 = pneg %p79
      %p86 = scmp.eq.s32.totalorder %s44, 1
      %p87 = por %p85, %p86
      %p88 = scmp.ne.s32.totalorder %s80, %s83
      %p89 = scmp.eq.s32.totalorder %s44, 0
      %p90 = por %p88, %p89
      %p91 = scmp.ne.s32.totalorder %s80, %s83
      %p92 = scmp.eq.s32.totalorder %s49, 1
      %p93 = por %p91, %p92
      %p94 = scmp.ne.s32.totalorder %s83, %s84
      %p95 = scmp.eq.s32.totalorder %s49, 0
      %p96 = por %p94, %p95
      %p97 = scmp.ne.s32.totalorder %s83, %s84
      %p98 = scmp.eq.s32.totalorder %s50, 1
      %p99 = por %p97, %p98
      %p101 = scmp.ne.s32.totalorder %s84, %s100
      %p102 = scmp.eq.s32.totalorder %s50, 0
      %p103 = por %p101, %p102
      %s105 = sadd.s32 %s104, 1
      %p108 = scmp.eq.s32.totalorder %s44, 1
      %p109 = scmp.ne.s32.totalorder %s104, %s106
      %p110 = scmp.eq.s32.totalorder %s44, 0
      %p111 = por %p109, %p110
      %p112 = scmp.ne.s32.totalorder %s104, %s106
      %p113 = scmp.eq.s32.totalorder %s49, 1
      %p114 = por %p112, %p113
      %p115 = scmp.ne.s32.totalorder %s106, %s107
      %p116 = scmp.eq.s32.totalorder %s49, 0
      %p117 = por %p115, %p116
      %p118 = scmp.ne.s32.totalorder %s106, %s107
      %p119 = scmp.eq.s32.totalorder %s50, 1
      %p120 = por %p118, %p119
      %p122 = scmp.ne.s32.totalorder %s107, %s121
      %p123 = scmp.eq.s32.totalorder %s50, 0
      %p124 = por %p122, %p123
      %s126 = sadd.s32 %s125, 1
      %p129 = scmp.eq.s32.totalorder %s44, 1
      %p130 = scmp.ne.s32.totalorder %s125, %s127
      %p131 = scmp.eq.s32.totalorder %s44, 0
      %p132 = por %p130, %p131
      %p133 = scmp.ne.s32.totalorder %s125, %s127
      %p134 = scmp.eq.s32.totalorder %s49, 1
      %p135 = por %p133, %p134
      %p136 = scmp.ne.s32.totalorder %s127, %s128
      %p137 = scmp.eq.s32.totalorder %s49, 0
      %p138 = por %p136, %p137
      %p139 = scmp.ne.s32.totalorder %s127, %s128
      %p140 = scmp.eq.s32.totalorder %s50, 1
      %p141 = por %p139, %p140
      %p143 = scmp.ne.s32.totalorder %s128, %s142
      %p144 = scmp.eq.s32.totalorder %s50, 0
      %p145 = por %p143, %p144
      %s147 = sadd.s32 %s146, 1
      %p150 = scmp.eq.s32.totalorder %s44, 1
      %p151 = scmp.ne.s32.totalorder %s146, %s148
      %p152 = scmp.eq.s32.totalorder %s44, 0
      %p153 = por %p151, %p152
      %p154 = scmp.ne.s32.totalorder %s146, %s148
      %p155 = scmp.eq.s32.totalorder %s49, 1
      %p156 = por %p154, %p155
      %p157 = scmp.ne.s32.totalorder %s148, %s149
      %p158 = scmp.eq.s32.totalorder %s49, 0
      %p159 = por %p157, %p158
      %p160 = scmp.ne.s32.totalorder %s148, %s149
      %p161 = scmp.eq.s32.totalorder %s50, 1
      %p162 = por %p160, %p161
      %p164 = scmp.ne.s32.totalorder %s149, %s163
      %p165 = scmp.eq.s32.totalorder %s50, 0
      %p166 = por %p164, %p165
      %s168 = sadd.s32 %s167, 1
      %p171 = scmp.eq.s32.totalorder %s44, 1
      %p172 = scmp.ne.s32.totalorder %s167, %s169
      %p173 = scmp.eq.s32.totalorder %s44, 0
      %p174 = por %p172, %p173
      %p175 = scmp.ne.s32.totalorder %s167, %s169
      %p176 = scmp.eq.s32.totalorder %s49, 1
      %p177 = por %p175, %p176
      %p178 = scmp.ne.s32.totalorder %s169, %s170
      %p179 = scmp.eq.s32.totalorder %s49, 0
      %p180 = por %p178, %p179
      %p181 = scmp.ne.s32.totalorder %s169, %s170
      %p182 = scmp.eq.s32.totalorder %s50, 1
      %p183 = por %p181, %p182
      %p185 = scmp.ne.s32.totalorder %s170, %s184
      %p186 = scmp.eq.s32.totalorder %s50, 0
      %p187 = por %p185, %p186
      %s189 = sadd.s32 %s188, 1
      %p192 = scmp.eq.s32.totalorder %s44, 1
      %p193 = scmp.ne.s32.totalorder %s188, %s190
      %p194 = scmp.eq.s32.totalorder %s44, 0
      %p195 = por %p193, %p194
      %p196 = scmp.ne.s32.totalorder %s188, %s190
      %p197 = scmp.eq.s32.totalorder %s49, 1
      %p198 = por %p196, %p197
      %p199 = scmp.ne.s32.totalorder %s190, %s191
      %p200 = scmp.eq.s32.totalorder %s49, 0
      %p201 = por %p199, %p200
      %p202 = scmp.ne.s32.totalorder %s190, %s191
      %p203 = scmp.eq.s32.totalorder %s50, 1
      %p204 = por %p202, %p203
      %p206 = scmp.ne.s32.totalorder %s191, %s205
      %p207 = scmp.eq.s32.totalorder %s50, 0
      %p208 = por %p206, %p207
      %s210 = sadd.s32 %s209, 1
      %p213 = scmp.eq.s32.totalorder %s44, 1
      %p214 = scmp.ne.s32.totalorder %s209, %s211
      %p215 = scmp.eq.s32.totalorder %s44, 0
      %p216 = por %p214, %p215
      %p217 = scmp.ne.s32.totalorder %s209, %s211
      %p218 = scmp.eq.s32.totalorder %s49, 1
      %p219 = por %p217, %p218
      %p220 = scmp.ne.s32.totalorder %s211, %s212
      %p221 = scmp.eq.s32.totalorder %s49, 0
      %p222 = por %p220, %p221
      %p223 = scmp.ne.s32.totalorder %s211, %s212
      %p224 = scmp.eq.s32.totalorder %s50, 1
      %p225 = por %p223, %p224
      %p227 = scmp.ne.s32.totalorder %s212, %s226
      %p228 = scmp.eq.s32.totalorder %s50, 0
      %p229 = por %p227, %p228
      %s231 = sadd.s32 %s230, 1
      %p234 = scmp.eq.s32.totalorder %s44, 1
      %p235 = scmp.ne.s32.totalorder %s230, %s232
      %p236 = scmp.eq.s32.totalorder %s44, 0
      %p237 = por %p235, %p236
      %p238 = scmp.ne.s32.totalorder %s230, %s232
      %p239 = scmp.eq.s32.totalorder %s49, 1
      %p240 = por %p238, %p239
      %p241 = scmp.ne.s32.totalorder %s232, %s233
      %p242 = scmp.eq.s32.totalorder %s49, 0
      %p243 = por %p241, %p242
      %p244 = scmp.ne.s32.totalorder %s232, %s233
      %p245 = scmp.eq.s32.totalorder %s50, 1
      %p246 = por %p244, %p245
      %p248 = scmp.ne.s32.totalorder %s233, %s247
      %p249 = scmp.eq.s32.totalorder %s50, 0
      %p250 = por %p248, %p249
      %s252 = sadd.s32 %s251, 1
      %p255 = scmp.eq.s32.totalorder %s44, 1
      %p256 = scmp.ne.s32.totalorder %s251, %s253
      %p257 = scmp.eq.s32.totalorder %s44, 0
      %p258 = por %p256, %p257
      %p259 = scmp.ne.s32.totalorder %s251, %s253
      %p260 = scmp.eq.s32.totalorder %s49, 1
      %p261 = por %p259, %p260
      %p262 = scmp.ne.s32.totalorder %s253, %s254
      %p263 = scmp.eq.s32.totalorder %s49, 0
      %p264 = por %p262, %p263
      %p265 = scmp.ne.s32.totalorder %s253, %s254
      %p266 = scmp.eq.s32.totalorder %s50, 1
      %p267 = por %p265, %p266
      %p269 = scmp.ne.s32.totalorder %s254, %s268
      %p270 = scmp.eq.s32.totalorder %s50, 0
      %p271 = por %p269, %p270
      %s273 = sadd.s32 %s272, 1
      %p276 = scmp.eq.s32.totalorder %s44, 1
      %p277 = scmp.ne.s32.totalorder %s272, %s274
      %p278 = scmp.eq.s32.totalorder %s44, 0
      %p279 = por %p277, %p278
      %p280 = scmp.ne.s32.totalorder %s272, %s274
      %p281 = scmp.eq.s32.totalorder %s49, 1
      %p282 = por %p280, %p281
      %p283 = scmp.ne.s32.totalorder %s274, %s275
      %p284 = scmp.eq.s32.totalorder %s49, 0
      %p285 = por %p283, %p284
      %p286 = scmp.ne.s32.totalorder %s274, %s275
      %p287 = scmp.eq.s32.totalorder %s50, 1
      %p288 = por %p286, %p287
      %p290 = scmp.ne.s32.totalorder %s275, %s289
      %p291 = scmp.eq.s32.totalorder %s50, 0
      %p292 = por %p290, %p291
      %s294 = sadd.s32 %s293, 1
      %p297 = scmp.eq.s32.totalorder %s44, 1
      %p298 = scmp.ne.s32.totalorder %s293, %s295
      %p299 = scmp.eq.s32.totalorder %s44, 0
      %p300 = por %p298, %p299
      %p301 = scmp.ne.s32.totalorder %s293, %s295
      %p302 = scmp.eq.s32.totalorder %s49, 1
      %p303 = por %p301, %p302
      %p304 = scmp.ne.s32.totalorder %s295, %s296
      %p305 = scmp.eq.s32.totalorder %s49, 0
      %p306 = por %p304, %p305
      %p307 = scmp.ne.s32.totalorder %s295, %s296
      %p308 = scmp.eq.s32.totalorder %s50, 1
      %p309 = por %p307, %p308
      %p311 = scmp.ne.s32.totalorder %s296, %s310
      %p312 = scmp.eq.s32.totalorder %s50, 0
      %p313 = por %p311, %p312
      %s315 = sadd.s32 %s314, 1
      %p318 = scmp.eq.s32.totalorder %s44, 1
      %p319 = scmp.ne.s32.totalorder %s314, %s316
      %p320 = scmp.eq.s32.totalorder %s44, 0
      %p321 = por %p319, %p320
      %p322 = scmp.ne.s32.totalorder %s314, %s316
      %p323 = scmp.eq.s32.totalorder %s49, 1
      %p324 = por %p322, %p323
      %p325 = scmp.ne.s32.totalorder %s316, %s317
      %p326 = scmp.eq.s32.totalorder %s49, 0
      %p327 = por %p325, %p326
      %p328 = scmp.ne.s32.totalorder %s316, %s317
      %p329 = scmp.eq.s32.totalorder %s50, 1
      %p330 = por %p328, %p329
      %p332 = scmp.ne.s32.totalorder %s317, %s331
      %p333 = scmp.eq.s32.totalorder %s50, 0
      %p334 = por %p332, %p333
      %s336 = sadd.s32 %s335, 1
      %p339 = scmp.eq.s32.totalorder %s44, 1
      %p340 = scmp.ne.s32.totalorder %s335, %s337
      %p341 = scmp.eq.s32.totalorder %s44, 0
      %p342 = por %p340, %p341
      %p343 = scmp.ne.s32.totalorder %s335, %s337
      %p344 = scmp.eq.s32.totalorder %s49, 1
      %p345 = por %p343, %p344
      %p346 = scmp.ne.s32.totalorder %s337, %s338
      %p347 = scmp.eq.s32.totalorder %s49, 0
      %p348 = por %p346, %p347
      %p349 = scmp.ne.s32.totalorder %s337, %s338
      %p350 = scmp.eq.s32.totalorder %s50, 1
      %p351 = por %p349, %p350
      %p353 = scmp.ne.s32.totalorder %s338, %s352
      %p354 = scmp.eq.s32.totalorder %s50, 0
      %p355 = por %p353, %p354
      %s357 = sadd.s32 %s356, 1
      %p360 = scmp.eq.s32.totalorder %s44, 1
      %p361 = scmp.ne.s32.totalorder %s356, %s358
      %p362 = scmp.eq.s32.totalorder %s44, 0
      %p363 = por %p361, %p362
      %p364 = scmp.ne.s32.totalorder %s356, %s358
      %p365 = scmp.eq.s32.totalorder %s49, 1
      %p366 = por %p364, %p365
      %p367 = scmp.ne.s32.totalorder %s358, %s359
      %p368 = scmp.eq.s32.totalorder %s49, 0
      %p369 = por %p367, %p368
      %p370 = scmp.ne.s32.totalorder %s358, %s359
      %p371 = scmp.eq.s32.totalorder %s50, 1
      %p372 = por %p370, %p371
      %p374 = scmp.ne.s32.totalorder %s359, %s373
      %p375 = scmp.eq.s32.totalorder %s50, 0
      %p376 = por %p374, %p375
      %s378 = sadd.s32 %s377, 1
      %p381 = scmp.eq.s32.totalorder %s44, 1
      %p382 = scmp.ne.s32.totalorder %s377, %s379
      %p383 = scmp.eq.s32.totalorder %s44, 0
      %p384 = por %p382, %p383
      %p385 = scmp.ne.s32.totalorder %s377, %s379
      %p386 = scmp.eq.s32.totalorder %s49, 1
      %p387 = por %p385, %p386
      %p388 = scmp.ne.s32.totalorder %s379, %s380
      %p389 = scmp.eq.s32.totalorder %s49, 0
      %p390 = por %p388, %p389
      %p391 = scmp.ne.s32.totalorder %s379, %s380
      %p392 = scmp.eq.s32.totalorder %s50, 1
      %p393 = por %p391, %p392
      %p395 = scmp.ne.s32.totalorder %s380, %s394
      %p396 = scmp.eq.s32.totalorder %s50, 0
      %p397 = por %p395, %p396
      %s399 = sadd.s32 %s398, 1
      %p402 = scmp.eq.s32.totalorder %s44, 1
      %p403 = scmp.ne.s32.totalorder %s398, %s400
      %p404 = scmp.eq.s32.totalorder %s44, 0
      %p405 = por %p403, %p404
      %p406 = scmp.ne.s32.totalorder %s398, %s400
      %p407 = scmp.eq.s32.totalorder %s49, 1
      %p408 = por %p406, %p407
      %p409 = scmp.ne.s32.totalorder %s400, %s401
      %p410 = scmp.eq.s32.totalorder %s49, 0
      %p411 = por %p409, %p410
      %p412 = scmp.ne.s32.totalorder %s400, %s401
      %p413 = scmp.eq.s32.totalorder %s50, 1
      %p414 = por %p412, %p413
      %p416 = scmp.ne.s32.totalorder %s401, %s415
      %p417 = scmp.eq.s32.totalorder %s50, 0
      %p418 = por %p416, %p417
      %s420 = sadd.s32 %s419, 1
      %p423 = scmp.eq.s32.totalorder %s44, 1
      %p424 = scmp.ne.s32.totalorder %s419, %s421
      %p425 = scmp.eq.s32.totalorder %s44, 0
      %p426 = por %p424, %p425
      %p427 = scmp.ne.s32.totalorder %s419, %s421
      %p428 = scmp.eq.s32.totalorder %s49, 1
      %p429 = por %p427, %p428
      %p430 = scmp.ne.s32.totalorder %s421, %s422
      %p431 = scmp.eq.s32.totalorder %s49, 0
      %p432 = por %p430, %p431
      %p433 = scmp.ne.s32.totalorder %s421, %s422
      %p434 = scmp.eq.s32.totalorder %s50, 1
      %p435 = por %p433, %p434
      %p437 = scmp.ne.s32.totalorder %s422, %s436
      %p438 = scmp.eq.s32.totalorder %s50, 0
      %p439 = por %p437, %p438
      %s441 = sadd.s32 %s440, 1
      %p444 = scmp.eq.s32.totalorder %s44, 1
      %p445 = scmp.ne.s32.totalorder %s440, %s442
      %p446 = scmp.eq.s32.totalorder %s44, 0
      %p447 = por %p445, %p446
      %p448 = scmp.ne.s32.totalorder %s440, %s442
      %p449 = scmp.eq.s32.totalorder %s49, 1
      %p450 = por %p448, %p449
      %p451 = scmp.ne.s32.totalorder %s442, %s443
      %p452 = scmp.eq.s32.totalorder %s49, 0
      %p453 = por %p451, %p452
      %p454 = scmp.ne.s32.totalorder %s442, %s443
      %p455 = scmp.eq.s32.totalorder %s50, 1
      %p456 = por %p454, %p455
      %p458 = scmp.ne.s32.totalorder %s443, %s457
      %p459 = scmp.eq.s32.totalorder %s50, 0
      %p460 = por %p458, %p459
      %s462 = sadd.s32 %s461, 1
      %p465 = scmp.eq.s32.totalorder %s44, 1
      %p466 = scmp.ne.s32.totalorder %s461, %s463
      %p467 = scmp.eq.s32.totalorder %s44, 0
      %p468 = por %p466, %p467
      %p469 = scmp.ne.s32.totalorder %s461, %s463
      %p470 = scmp.eq.s32.totalorder %s49, 1
      %p471 = por %p469, %p470
      %p472 = scmp.ne.s32.totalorder %s463, %s464
      %p473 = scmp.eq.s32.totalorder %s49, 0
      %p474 = por %p472, %p473
      %p475 = scmp.ne.s32.totalorder %s463, %s464
      %p476 = scmp.eq.s32.totalorder %s50, 1
      %p477 = por %p475, %p476
      %p479 = scmp.ne.s32.totalorder %s464, %s478
      %p480 = scmp.eq.s32.totalorder %s50, 0
      %p481 = por %p479, %p480
      %s483 = sadd.s32 %s482, 1
      %p486 = scmp.eq.s32.totalorder %s44, 1
      %p487 = scmp.ne.s32.totalorder %s482, %s484
      %p488 = scmp.eq.s32.totalorder %s44, 0
      %p489 = por %p487, %p488
      %p490 = scmp.ne.s32.totalorder %s482, %s484
      %p491 = scmp.eq.s32.totalorder %s49, 1
      %p492 = por %p490, %p491
      %p493 = scmp.ne.s32.totalorder %s484, %s485
      %p494 = scmp.eq.s32.totalorder %s49, 0
      %p495 = por %p493, %p494
      %p496 = scmp.ne.s32.totalorder %s484, %s485
      %p497 = scmp.eq.s32.totalorder %s50, 1
      %p498 = por %p496, %p497
      %p500 = scmp.ne.s32.totalorder %s485, %s499
      %p501 = scmp.eq.s32.totalorder %s50, 0
      %p502 = por %p500, %p501
      %s504 = sadd.s32 %s503, 1
      %p507 = scmp.eq.s32.totalorder %s44, 1
      %p508 = scmp.ne.s32.totalorder %s503, %s505
      %p509 = scmp.eq.s32.totalorder %s44, 0
      %p510 = por %p508, %p509
      %p511 = scmp.ne.s32.totalorder %s503, %s505
      %p512 = scmp.eq.s32.totalorder %s49, 1
      %p513 = por %p511, %p512
      %p514 = scmp.ne.s32.totalorder %s505, %s506
      %p515 = scmp.eq.s32.totalorder %s49, 0
      %p516 = por %p514, %p515
      %p517 = scmp.ne.s32.totalorder %s505, %s506
      %p518 = scmp.eq.s32.totalorder %s50, 1
      %p519 = por %p517, %p518
      %p521 = scmp.ne.s32.totalorder %s506, %s520
      %p522 = scmp.eq.s32.totalorder %s50, 0
      %p523 = por %p521, %p522
      %s524 = ssub.s32 %s44, %s51
      %p525 = scmp.eq.s32.totalorder %s524, 0
      %s527 = sadd.s32 %s526, 1
      %s528 = scalar_select %p525, %s526, %s527
      %p531 = pneg %p525
      %p532 = scmp.eq.s32.totalorder %s44, 1
      %p533 = por %p531, %p532
      %p534 = scmp.ne.s32.totalorder %s526, %s529
      %p535 = scmp.eq.s32.totalorder %s44, 0
      %p536 = por %p534, %p535
      %p537 = scmp.ne.s32.totalorder %s526, %s529
      %p538 = scmp.eq.s32.totalorder %s49, 1
      %p539 = por %p537, %p538
      %p540 = scmp.ne.s32.totalorder %s529, %s530
      %p541 = scmp.eq.s32.totalorder %s49, 0
      %p542 = por %p540, %p541
      %p543 = scmp.ne.s32.totalorder %s529, %s530
      %p544 = scmp.eq.s32.totalorder %s50, 1
      %p545 = por %p543, %p544
      %p547 = scmp.ne.s32.totalorder %s530, %s546
      %p548 = scmp.eq.s32.totalorder %s50, 0
      %p549 = por %p547, %p548
      %s550 = ssub.s32 %s44, %s51
      %p551 = scmp.eq.s32.totalorder %s550, 0
      %s553 = sadd.s32 %s552, 1
      %s554 = scalar_select %p551, %s552, %s553
      %p557 = pneg %p551
      %p558 = scmp.eq.s32.totalorder %s44, 1
      %p559 = por %p557, %p558
      %p560 = scmp.ne.s32.totalorder %s552, %s555
      %p561 = scmp.eq.s32.totalorder %s44, 0
      %p562 = por %p560, %p561
      %p563 = scmp.ne.s32.totalorder %s552, %s555
      %p564 = scmp.eq.s32.totalorder %s49, 1
      %p565 = por %p563, %p564
      %p566 = scmp.ne.s32.totalorder %s555, %s556
      %p567 = scmp.eq.s32.totalorder %s49, 0
      %p568 = por %p566, %p567
      %p569 = scmp.ne.s32.totalorder %s555, %s556
      %p570 = scmp.eq.s32.totalorder %s50, 1
      %p571 = por %p569, %p570
      %p573 = scmp.ne.s32.totalorder %s556, %s572
      %p574 = scmp.eq.s32.totalorder %s50, 0
      %p575 = por %p573, %p574
      %s576 = ssub.s32 %s44, %s51
      %p577 = scmp.eq.s32.totalorder %s576, 0
      %s579 = sadd.s32 %s578, 1
      %s580 = scalar_select %p577, %s578, %s579
      %p583 = pneg %p577
      %p584 = scmp.eq.s32.totalorder %s44, 1
      %p585 = por %p583, %p584
      %p586 = scmp.ne.s32.totalorder %s578, %s581
      %p587 = scmp.eq.s32.totalorder %s44, 0
      %p588 = por %p586, %p587
      %p589 = scmp.ne.s32.totalorder %s578, %s581
      %p590 = scmp.eq.s32.totalorder %s49, 1
      %p591 = por %p589, %p590
      %p592 = scmp.ne.s32.totalorder %s581, %s582
      %p593 = scmp.eq.s32.totalorder %s49, 0
      %p594 = por %p592, %p593
      %p595 = scmp.ne.s32.totalorder %s581, %s582
      %p596 = scmp.eq.s32.totalorder %s50, 1
      %p597 = por %p595, %p596
      %p599 = scmp.ne.s32.totalorder %s582, %s598
      %p600 = scmp.eq.s32.totalorder %s50, 0
      %p601 = por %p599, %p600
      %p602 = scmp.le.s32.totalorder 1, %s44
      %p603 = scmp.lt.s32.totalorder %s44, 3
      %p604 = pnand %p602, %p603
      %p605 = pneg %p604
      // Predicated region
      $region9: #{tpu_custom_call.1} parent=5 // pred_check
        _
      $region10: #{tpu_custom_call.1} parent=5 // pred_check_branch
        %607 = sbr.rel (%p604) target = $region12
      $region11: #{tpu_custom_call.1} parent=5 // pred_region
        %s608 = ssub.s32 %s44, 1
        // Predicated region
        $region13: #{tpu_custom_call.1} parent=11 // pred_check
          %p609 = pneg %p117
        $region14: #{tpu_custom_call.1} parent=11 // pred_check_branch
          %611 = sbr.rel (%p609) target = $region16
        $region15: #{tpu_custom_call.1} parent=11 // pred_region
          %613 = vsyncadd [#allocation4], 0
          %s614 = sshll.u32 %s2, 4
          %s615 = int_to_ptr.hbm [resolvable:$true] %s614
          %s616 = sshll.u32 [#allocation3], 4
          %s617 = int_to_ptr.vmem [resolvable:$true] %s616
          %622 = dma.hbm_to_vmem [thread:$0]  %s615, 128, %s617, [#allocation4], 64, 64, 4
        $region16: #{tpu_custom_call.1} parent=11 // pred_fallthru
          _
        // Predicated region
        $region17: #{tpu_custom_call.1} parent=11 // pred_check
          %p623 = pneg %p138
        $region18: #{tpu_custom_call.1} parent=11 // pred_check_branch
          %625 = sbr.rel (%p623) target = $region20
        $region19: #{tpu_custom_call.1} parent=11 // pred_region
          _
        $region20: #{tpu_custom_call.1} parent=11 // pred_fallthru
          _
        // Predicated region
        $region21: #{tpu_custom_call.1} parent=11 // pred_check
          %p626 = pneg %p159
        $region22: #{tpu_custom_call.1} parent=11 // pred_check_branch
          %628 = sbr.rel (%p626) target = $region24
        $region23: #{tpu_custom_call.1} parent=11 // pred_region
          %630 = vsyncadd [#allocation7], 0
          %s631 = sshll.u32 %s4, 4
          %s632 = int_to_ptr.hbm [resolvable:$true] %s631
          %s633 = sshll.u32 [#allocation6], 4
          %s634 = int_to_ptr.vmem [resolvable:$true] %s633
          %639 = dma.hbm_to_vmem [thread:$0]  %s632, 256, %s634, [#allocation7], 64, 64, 4
        $region24: #{tpu_custom_call.1} parent=11 // pred_fallthru
          _
        // Predicated region
        $region25: #{tpu_custom_call.1} parent=11 // pred_check
          %p640 = pneg %p180
        $region26: #{tpu_custom_call.1} parent=11 // pred_check_branch
          %642 = sbr.rel (%p640) target = $region28
        $region27: #{tpu_custom_call.1} parent=11 // pred_region
          _
        $region28: #{tpu_custom_call.1} parent=11 // pred_fallthru
          _
        // Predicated region
        $region29: #{tpu_custom_call.1} parent=11 // pred_check
          %p643 = pneg %p201
        $region30: #{tpu_custom_call.1} parent=11 // pred_check_branch
          %645 = sbr.rel (%p643) target = $region32
        $region31: #{tpu_custom_call.1} parent=11 // pred_region
          %647 = vsyncadd [#allocation7], 0
          %s648 = sshll.u32 %s6, 4
          %s649 = int_to_ptr.hbm [resolvable:$true] %s648
          %s650 = sshll.u32 [#allocation8], 4
          %s651 = int_to_ptr.vmem [resolvable:$true] %s650
          %656 = dma.hbm_to_vmem [thread:$0]  %s649, 256, %s651, [#allocation7], 64, 64, 4
        $region32: #{tpu_custom_call.1} parent=11 // pred_fallthru
          _
        // Predicated region
        $region33: #{tpu_custom_call.1} parent=11 // pred_check
          %p657 = pneg %p222
        $region34: #{tpu_custom_call.1} parent=11 // pred_check_branch
          %659 = sbr.rel (%p657) target = $region36
        $region35: #{tpu_custom_call.1} parent=11 // pred_region
          _
        $region36: #{tpu_custom_call.1} parent=11 // pred_fallthru
          _
        // Predicated region
        $region37: #{tpu_custom_call.1} parent=11 // pred_check
          %p660 = pneg %p243
        $region38: #{tpu_custom_call.1} parent=11 // pred_check_branch
          %662 = sbr.rel (%p660) target = $region40
        $region39: #{tpu_custom_call.1} parent=11 // pred_region
          _
        $region40: #{tpu_custom_call.1} parent=11 // pred_fallthru
          _
        // Predicated region
        $region41: #{tpu_custom_call.1} parent=11 // pred_check
          %p663 = pneg %p264
        $region42: #{tpu_custom_call.1} parent=11 // pred_check_branch
          %665 = sbr.rel (%p663) target = $region44
        $region43: #{tpu_custom_call.1} parent=11 // pred_region
          _
        $region44: #{tpu_custom_call.1} parent=11 // pred_fallthru
          _
        // Predicated region
        $region45: #{tpu_custom_call.1} parent=11 // pred_check
          %p666 = pneg %p285
        $region46: #{tpu_custom_call.1} parent=11 // pred_check_branch
          %668 = sbr.rel (%p666) target = $region48
        $region47: #{tpu_custom_call.1} parent=11 // pred_region
          _
        $region48: #{tpu_custom_call.1} parent=11 // pred_fallthru
          _
        // Predicated region
        $region49: #{tpu_custom_call.1} parent=11 // pred_check
          %p669 = pneg %p306
        $region50: #{tpu_custom_call.1} parent=11 // pred_check_branch
          %671 = sbr.rel (%p669) target = $region52
        $region51: #{tpu_custom_call.1} parent=11 // pred_region
          %673 = vsyncadd [#allocation10], 0
          %s674 = sshll.u32 %s11, 4
          %s675 = int_to_ptr.hbm [resolvable:$true] %s674
          %s676 = sshll.u32 [#allocation9], 4
          %s677 = int_to_ptr.vmem [resolvable:$true] %s676
          %682 = dma.hbm_to_vmem [thread:$0]  %s675, 256, %s677, [#allocation10], 64, 64, 4
        $region52: #{tpu_custom_call.1} parent=11 // pred_fallthru
          _
        // Predicated region
        $region53: #{tpu_custom_call.1} parent=11 // pred_check
          %p683 = pneg %p327
        $region54: #{tpu_custom_call.1} parent=11 // pred_check_branch
          %685 = sbr.rel (%p683) target = $region56
        $region55: #{tpu_custom_call.1} parent=11 // pred_region
          %687 = vsyncadd [#allocation10], 0
          %s688 = sshll.u32 %s12, 4
          %s689 = int_to_ptr.hbm [resolvable:$true] %s688
          %s690 = sshll.u32 [#allocation11], 4
          %s691 = int_to_ptr.vmem [resolvable:$true] %s690
          %696 = dma.hbm_to_vmem [thread:$0]  %s689, 256, %s691, [#allocation10], 64, 64, 4
        $region56: #{tpu_custom_call.1} parent=11 // pred_fallthru
          _
        // Predicated region
        $region57: #{tpu_custom_call.1} parent=11 // pred_check
          %p697 = pneg %p348
        $region58: #{tpu_custom_call.1} parent=11 // pred_check_branch
          %699 = sbr.rel (%p697) target = $region60
        $region59: #{tpu_custom_call.1} parent=11 // pred_region
          _
        $region60: #{tpu_custom_call.1} parent=11 // pred_fallthru
          _
        // Predicated region
        $region61: #{tpu_custom_call.1} parent=11 // pred_check
          %p700 = pneg %p369
        $region62: #{tpu_custom_call.1} parent=11 // pred_check_branch
          %702 = sbr.rel (%p700) target = $region64
        $region63: #{tpu_custom_call.1} parent=11 // pred_region
          %704 = vsyncadd [#allocation13], 0
          %s705 = sshll.u32 %s14, 4
          %s706 = int_to_ptr.hbm [resolvable:$true] %s705
          %s707 = sshll.u32 [#allocation12], 4
          %s708 = int_to_ptr.vmem [resolvable:$true] %s707
          %713 = dma.hbm_to_vmem [thread:$0]  %s706, 256, %s708, [#allocation13], 64, 64, 4
        $region64: #{tpu_custom_call.1} parent=11 // pred_fallthru
          _
        // Predicated region
        $region65: #{tpu_custom_call.1} parent=11 // pred_check
          %p714 = pneg %p390
        $region66: #{tpu_custom_call.1} parent=11 // pred_check_branch
          %716 = sbr.rel (%p714) target = $region68
        $region67: #{tpu_custom_call.1} parent=11 // pred_region
          _
        $region68: #{tpu_custom_call.1} parent=11 // pred_fallthru
          _
        // Predicated region
        $region69: #{tpu_custom_call.1} parent=11 // pred_check
          %p717 = pneg %p411
        $region70: #{tpu_custom_call.1} parent=11 // pred_check_branch
          %719 = sbr.rel (%p717) target = $region72
        $region71: #{tpu_custom_call.1} parent=11 // pred_region
          %721 = vsyncadd [#allocation13], 0
          %s722 = sshll.u32 %s16, 4
          %s723 = int_to_ptr.hbm [resolvable:$true] %s722
          %s724 = sshll.u32 [#allocation14], 4
          %s725 = int_to_ptr.vmem [resolvable:$true] %s724
          %730 = dma.hbm_to_vmem [thread:$0]  %s723, 256, %s725, [#allocation13], 64, 64, 4
        $region72: #{tpu_custom_call.1} parent=11 // pred_fallthru
          _
        // Predicated region
        $region73: #{tpu_custom_call.1} parent=11 // pred_check
          %p731 = pneg %p432
        $region74: #{tpu_custom_call.1} parent=11 // pred_check_branch
          %733 = sbr.rel (%p731) target = $region76
        $region75: #{tpu_custom_call.1} parent=11 // pred_region
          _
        $region76: #{tpu_custom_call.1} parent=11 // pred_fallthru
          _
        // Predicated region
        $region77: #{tpu_custom_call.1} parent=11 // pred_check
          %p734 = pneg %p453
        $region78: #{tpu_custom_call.1} parent=11 // pred_check_branch
          %736 = sbr.rel (%p734) target = $region80
        $region79: #{tpu_custom_call.1} parent=11 // pred_region
          %738 = vsyncadd [#allocation16], 0
          %s739 = sshll.u32 %s18, 4
          %s740 = int_to_ptr.hbm [resolvable:$true] %s739
          %s741 = sshll.u32 [#allocation15], 4
          %s742 = int_to_ptr.vmem [resolvable:$true] %s741
          %747 = dma.hbm_to_vmem [thread:$0]  %s740, 256, %s742, [#allocation16], 64, 64, 4
        $region80: #{tpu_custom_call.1} parent=11 // pred_fallthru
          _
        // Predicated region
        $region81: #{tpu_custom_call.1} parent=11 // pred_check
          %p748 = pneg %p474
        $region82: #{tpu_custom_call.1} parent=11 // pred_check_branch
          %750 = sbr.rel (%p748) target = $region84
        $region83: #{tpu_custom_call.1} parent=11 // pred_region
          _
        $region84: #{tpu_custom_call.1} parent=11 // pred_fallthru
          _
        // Predicated region
        $region85: #{tpu_custom_call.1} parent=11 // pred_check
          %p751 = pneg %p495
        $region86: #{tpu_custom_call.1} parent=11 // pred_check_branch
          %753 = sbr.rel (%p751) target = $region88
        $region87: #{tpu_custom_call.1} parent=11 // pred_region
          _
        $region88: #{tpu_custom_call.1} parent=11 // pred_fallthru
          _
        // Predicated region
        $region89: #{tpu_custom_call.1} parent=11 // pred_check
          %p754 = pneg %p516
        $region90: #{tpu_custom_call.1} parent=11 // pred_check_branch
          %756 = sbr.rel (%p754) target = $region92
        $region91: #{tpu_custom_call.1} parent=11 // pred_region
          _
        $region92: #{tpu_custom_call.1} parent=11 // pred_fallthru
          _
      $region12: #{tpu_custom_call.1} parent=5 // pred_fallthru
        _
      %p757 = scmp.lt.s32.totalorder %s44, 2
      // Predicated region
      $region93: #{tpu_custom_call.1} parent=5 // pred_check
        %p758 = pneg %p757
      $region94: #{tpu_custom_call.1} parent=5 // pred_check_branch
        %760 = sbr.rel (%p758) target = $region96
      $region95: #{tpu_custom_call.1} parent=5 // pred_region
        // Predicated region
        $region97: #{tpu_custom_call.1} parent=95 // pred_check
          %p761 = pneg %p64
        $region98: #{tpu_custom_call.1} parent=95 // pred_check_branch
          %763 = sbr.rel (%p761) target = $region100
        $region99: #{tpu_custom_call.1} parent=95 // pred_region
          %p764 = scmp.lt.s32.totalorder %s44, 1
          %s765 = scalar_select %p764, %s44, 1
          %s766 = smul.addr %s765, 8
          %s767 = scalar_lea.vmem %s0, %s766
        $region100: #{tpu_custom_call.1} parent=95 // pred_fallthru
          _
        // Predicated region
        $region101: #{tpu_custom_call.1} parent=95 // pred_check
          %p768 = pneg %p90
        $region102: #{tpu_custom_call.1} parent=95 // pred_check_branch
          %770 = sbr.rel (%p768) target = $region104
        $region103: #{tpu_custom_call.1} parent=95 // pred_region
          %p771 = scmp.lt.s32.totalorder %s44, 1
          %s772 = scalar_select %p771, %s44, 1
          %s773 = smul.addr %s772, 8
          %s774 = scalar_lea.vmem %s1, %s773
        $region104: #{tpu_custom_call.1} parent=95 // pred_fallthru
          _
      $region96: #{tpu_custom_call.1} parent=5 // pred_fallthru
        _
      %p775 = scmp.le.s32.totalorder 1, %s44
      %p776 = scmp.lt.s32.totalorder %s44, 3
      %p777 = pnand %p775, %p776
      %p778 = pneg %p777
      // Predicated region
      $region105: #{tpu_custom_call.1} parent=5 // pred_check
        _
      $region106: #{tpu_custom_call.1} parent=5 // pred_check_branch
        %780 = sbr.rel (%p777) target = $region108
      $region107: #{tpu_custom_call.1} parent=5 // pred_region
        %s781 = ssub.s32 %s44, 1
        // Predicated region
        $region109: #{tpu_custom_call.1} parent=107 // pred_check
          %p782 = pneg %p117
        $region110: #{tpu_custom_call.1} parent=107 // pred_check_branch
          %784 = sbr.rel (%p782) target = $region112
        $region111: #{tpu_custom_call.1} parent=107 // pred_region
          %786 = dma.done [#allocation4], 128
        $region112: #{tpu_custom_call.1} parent=107 // pred_fallthru
          _
        // Predicated region
        $region113: #{tpu_custom_call.1} parent=107 // pred_check
          %p787 = pneg %p159
        $region114: #{tpu_custom_call.1} parent=107 // pred_check_branch
          %789 = sbr.rel (%p787) target = $region116
        $region115: #{tpu_custom_call.1} parent=107 // pred_region
          %791 = dma.done [#allocation7], 256
        $region116: #{tpu_custom_call.1} parent=107 // pred_fallthru
          _
        // Predicated region
        $region117: #{tpu_custom_call.1} parent=107 // pred_check
          %p792 = pneg %p201
        $region118: #{tpu_custom_call.1} parent=107 // pred_check_branch
          %794 = sbr.rel (%p792) target = $region120
        $region119: #{tpu_custom_call.1} parent=107 // pred_region
          %796 = dma.done [#allocation7], 256
        $region120: #{tpu_custom_call.1} parent=107 // pred_fallthru
          _
        // Predicated region
        $region121: #{tpu_custom_call.1} parent=107 // pred_check
          %p797 = pneg %p306
        $region122: #{tpu_custom_call.1} parent=107 // pred_check_branch
          %799 = sbr.rel (%p797) target = $region124
        $region123: #{tpu_custom_call.1} parent=107 // pred_region
          %801 = dma.done [#allocation10], 256
        $region124: #{tpu_custom_call.1} parent=107 // pred_fallthru
          _
        // Predicated region
        $region125: #{tpu_custom_call.1} parent=107 // pred_check
          %p802 = pneg %p327
        $region126: #{tpu_custom_call.1} parent=107 // pred_check_branch
          %804 = sbr.rel (%p802) target = $region128
        $region127: #{tpu_custom_call.1} parent=107 // pred_region
          %806 = dma.done [#allocation10], 256
        $region128: #{tpu_custom_call.1} parent=107 // pred_fallthru
          _
        // Predicated region
        $region129: #{tpu_custom_call.1} parent=107 // pred_check
          %p807 = pneg %p369
        $region130: #{tpu_custom_call.1} parent=107 // pred_check_branch
          %809 = sbr.rel (%p807) target = $region132
        $region131: #{tpu_custom_call.1} parent=107 // pred_region
          %811 = dma.done [#allocation13], 256
        $region132: #{tpu_custom_call.1} parent=107 // pred_fallthru
          _
        // Predicated region
        $region133: #{tpu_custom_call.1} parent=107 // pred_check
          %p812 = pneg %p411
        $region134: #{tpu_custom_call.1} parent=107 // pred_check_branch
          %814 = sbr.rel (%p812) target = $region136
        $region135: #{tpu_custom_call.1} parent=107 // pred_region
          %816 = dma.done [#allocation13], 256
        $region136: #{tpu_custom_call.1} parent=107 // pred_fallthru
          _
        // Predicated region
        $region137: #{tpu_custom_call.1} parent=107 // pred_check
          %p817 = pneg %p453
        $region138: #{tpu_custom_call.1} parent=107 // pred_check_branch
          %819 = sbr.rel (%p817) target = $region140
        $region139: #{tpu_custom_call.1} parent=107 // pred_region
          %821 = dma.done [#allocation16], 256
        $region140: #{tpu_custom_call.1} parent=107 // pred_fallthru
          _
        %p822 = scmp.lt.s32.totalorder %s49, 1
        %s823 = scalar_select %p822, %s49, 1
        %s824 = smul.addr %s823, 8
        %s825 = scalar_lea.vmem %s0, %s824
        %p826 = pneg %p70
        %p827 = pneg %p67
        %p828 = scmp.lt.s32.totalorder %s49, 1
        %s829 = scalar_select %p828, %s49, 1
        %s830 = smul.addr %s829, 8
        %s831 = scalar_lea.vmem %s1, %s830
        %p832 = pneg %p96
        %p833 = pneg %p93
        %p834 = pneg %p117
        %p835 = pneg %p114
        %p836 = pneg %p138
        %p837 = pneg %p135
        %p838 = pneg %p159
        %p839 = pneg %p156
        %p840 = pneg %p180
        %p841 = pneg %p177
        %p842 = pneg %p201
        %p843 = pneg %p198
        %p844 = pneg %p222
        %p845 = pneg %p219
        %p846 = pneg %p243
        %p847 = pneg %p240
        %p848 = pneg %p264
        %p849 = pneg %p261
        %p850 = pneg %p285
        %p851 = pneg %p282
        %p852 = pneg %p306
        %p853 = pneg %p303
        %p854 = pneg %p327
        %p855 = pneg %p324
        %p856 = pneg %p348
        %p857 = pneg %p345
        %p858 = pneg %p369
        %p859 = pneg %p366
        %p860 = pneg %p390
        %p861 = pneg %p387
        %p862 = pneg %p411
        %p863 = pneg %p408
        %p864 = pneg %p432
        %p865 = pneg %p429
        %p866 = pneg %p453
        %p867 = pneg %p450
        %p868 = pneg %p474
        %p869 = pneg %p471
        %p870 = pneg %p495
        %p871 = pneg %p492
        %p872 = pneg %p516
        %p873 = pneg %p513
        %p874 = pneg %p542
        %p875 = pneg %p539
        %s876 = sand.u32 %s529, 1
        %s877 = scalar_lea.sflag [#allocation5], %s876
        %s878 = sand.u32 %s529, 1
        %s879 = smul.addr %s878, 8
        %s880 = scalar_lea.vmem [#allocation17], %s879
        %p881 = pneg %p568
        %p882 = pneg %p565
        %s883 = sand.u32 %s49, 1
        %s884 = scalar_lea.sflag [#allocation19], %s883
        %s885 = sand.u32 %s555, 1
        %s886 = smul.addr %s885, 8
        %s887 = scalar_lea.vmem [#allocation18], %s886
        %p888 = pneg %p594
        %p889 = pneg %p591
        %s890 = sand.u32 %s49, 1
        %s891 = scalar_lea.sflag [#allocation19], %s890
        %s892 = sand.u32 %s581, 1
        %s893 = smul.addr %s892, 8
        %s894 = scalar_lea.vmem [#allocation20], %s893
        %p895 = scmp.lt.s32.totalorder %s49, 1
        %s896 = scalar_select %p895, %s49, 1
        %s897 = smul.addr %s896, 8
        %s898 = scalar_lea.vmem %s0, %s897
        %p899 = scmp.lt.s32.totalorder %s49, 1
        %s900 = scalar_select %p899, %s49, 1
        %s901 = smul.addr %s900, 8
        %s902 = scalar_lea.vmem %s1, %s901
        %v904 = vld [vmem:[%s898] sm:$0xff]
        %v905 = vld [vmem:[%s902] sm:$0xff]
        %v906 = vld [vmem:[#allocation3] sm:$0xf]
        %v907 = vld [vmem:[#allocation3 + $0x4] sm:$0xf]
        %v908 = vpack.c.bf16 %v905, %v904
        %v909 = vld [vmem:[%s3] sm:$0x1]
        %v911 = vperm.slane %v909, 0
        %v915 = vunpack.c.l.b16 %v906
        %v916 = vunpack.c.l.b16 %v907
        %v917 = vpack.c.b16 %v916, %v915
        %vm919 = vcmask 130048
        %v921 = vsel %vm919, %v908, 0
        %923 = vmatpush.bf16.msra.mxu0 0
        %924 = vmatpush.bf16.msra.mxu0 0
        %925 = vmatpush.bf16.msra.mxu0 0
        %926 = vmatpush.bf16.msra.mxu0 0
        %927 = vmatpush.bf16.msra.mxu0 0
        %928 = vmatpush.bf16.msra.mxu0 0
        %929 = vmatpush.bf16.msra.mxu0 0
        %930 = vmatpush.bf16.msra.mxu0 %v917
        %931 = vmatmul.bf16.gmra.mxu0 %v921
        %v932 = vpop.f32.mrf.mxu0
        %v933 = vadd.f32 %v911, %v932
        %v934 = vpop.f32.mrf.mxu0
        %v935 = vadd.f32 %v911, %v934
        %936 = vdwg.mxu0
        %vm937 = vcmp.gt.f32.partialorder %v933, 0.0
        %vm938 = vcmp.gt.f32.partialorder %v935, 0.0
        %v939 = vmul.f32 %v933, 0.01
        %v940 = vmul.f32 %v935, 0.01
        %v941 = vsel %vm937, %v933, %v939
        %v942 = vsel %vm938, %v935, %v940
        %v943 = vld [vmem:[#allocation6] sm:$0xf]
        %v944 = vld [vmem:[#allocation6 + $0x4] sm:$0xf]
        %v945 = vld [vmem:[#allocation6 + $0x8] sm:$0xf]
        %v946 = vld [vmem:[#allocation6 + $0xc] sm:$0xf]
        %v947 = vpack.c.bf16 %v942, %v941
        %v948 = vld [vmem:[%s5] sm:$0x1]
        %v950 = vperm.slane %v948, 0
        %v956 = vunpack.c.l.b16 %v943
        %v957 = vunpack.c.l.b16 %v944
        %v958 = vunpack.c.l.b16 %v945
        %v959 = vunpack.c.l.b16 %v946
        %v960 = vpack.c.b16 %v957, %v956
        %v961 = vpack.c.b16 %v959, %v958
        %vm964 = vcmask 261120
        %v966 = vsel %vm964, %v947, 0
        %968 = vmatpush.bf16.msra.mxu0 0
        %969 = vmatpush.bf16.msra.mxu0 0
        %970 = vmatpush.bf16.msra.mxu0 0
        %971 = vmatpush.bf16.msra.mxu0 0
        %972 = vmatpush.bf16.msra.mxu0 0
        %973 = vmatpush.bf16.msra.mxu0 0
        %974 = vmatpush.bf16.msra.mxu0 %v961
        %975 = vmatpush.bf16.msra.mxu0 %v960
        %976 = vmatmul.bf16.gmra.mxu0 %v966
        %v977 = vpop.f32.mrf.mxu0
        %v978 = vadd.f32 %v950, %v977
        %v979 = vpop.f32.mrf.mxu0
        %v980 = vadd.f32 %v950, %v979
        %981 = vdwg.mxu0
        %vm982 = vcmp.gt.f32.partialorder %v978, 0.0
        %vm983 = vcmp.gt.f32.partialorder %v980, 0.0
        %v984 = vmul.f32 %v978, 0.01
        %v985 = vmul.f32 %v980, 0.01
        %v986 = vsel %vm982, %v978, %v984
        %v987 = vsel %vm983, %v980, %v985
        %v988 = vld [vmem:[#allocation8] sm:$0xf]
        %v989 = vld [vmem:[#allocation8 + $0x4] sm:$0xf]
        %v990 = vld [vmem:[#allocation8 + $0x8] sm:$0xf]
        %v991 = vld [vmem:[#allocation8 + $0xc] sm:$0xf]
        %v992 = vpack.c.bf16 %v987, %v986
        %v993 = vld [vmem:[%s7] sm:$0x1]
        %v995 = vperm.slane %v993, 0
        %v1001 = vunpack.c.l.b16 %v988
        %v1002 = vunpack.c.l.b16 %v989
        %v1003 = vunpack.c.l.b16 %v990
        %v1004 = vunpack.c.l.b16 %v991
        %v1005 = vpack.c.b16 %v1002, %v1001
        %v1006 = vpack.c.b16 %v1004, %v1003
        %v1010 = vsel %vm964, %v992, 0
        %1012 = vmatpush.bf16.msra.mxu0 0
        %1013 = vmatpush.bf16.msra.mxu0 0
        %1014 = vmatpush.bf16.msra.mxu0 0
        %1015 = vmatpush.bf16.msra.mxu0 0
        %1016 = vmatpush.bf16.msra.mxu0 0
        %1017 = vmatpush.bf16.msra.mxu0 0
        %1018 = vmatpush.bf16.msra.mxu0 %v1006
        %1019 = vmatpush.bf16.msra.mxu0 %v1005
        %1020 = vmatmul.bf16.gmra.mxu0 %v1010
        %v1021 = vpop.f32.mrf.mxu0
        %v1022 = vadd.f32 %v995, %v1021
        %v1023 = vpop.f32.mrf.mxu0
        %v1024 = vadd.f32 %v995, %v1023
        %1025 = vdwg.mxu0
        %v1026 = vld [vmem:[%s10] sm:$0x1]
        %v1027 = vld [vmem:[%s9] sm:$0xf]
        %v1028 = vld [vmem:[%s9 + $0x4] sm:$0xf]
        %v1029 = vld [vmem:[%s9 + $0x8] sm:$0xf]
        %v1030 = vld [vmem:[%s9 + $0xc] sm:$0xf]
        %v1031 = vpack.c.bf16 %v1024, %v1022
        %v1036 = vunpack.c.l.b16 %v1027
        %v1037 = vunpack.c.l.b16 %v1028
        %v1038 = vunpack.c.l.b16 %v1029
        %v1039 = vunpack.c.l.b16 %v1030
        %v1040 = vpack.c.b16 %v1037, %v1036
        %v1041 = vpack.c.b16 %v1039, %v1038
        %v1045 = vsel %vm964, %v1031, 0
        %1047 = vmatpush.bf16.msra.mxu0 0
        %1048 = vmatpush.bf16.msra.mxu0 0
        %1049 = vmatpush.bf16.msra.mxu0 0
        %1050 = vmatpush.bf16.msra.mxu0 0
        %1051 = vmatpush.bf16.msra.mxu0 0
        %1052 = vmatpush.bf16.msra.mxu0 0
        %1053 = vmatpush.bf16.msra.mxu0 %v1041
        %1054 = vmatpush.bf16.msra.mxu0 %v1040
        %1055 = vmatmul.bf16.gmra.mxu0 %v1045
        %v1056 = vpop.f32.mrf.mxu0
        %v1057 = vadd.f32 0.0, %v1056
        %v1058 = vpop.f32.mrf.mxu0
        %v1059 = vadd.f32 0.0, %v1058
        %1060 = vdwg.mxu0
        %v1061 = vmul.f32 %v1057, 2.0
        %v1062 = vmul.f32 %v1059, 2.0
        %v1064 = vperm.slane %v1026, 0
        %v1066 = vsub.f32 %v1064, %v1061
        %v1067 = vsub.f32 %v1064, %v1062
        %vm1068 = vcmask 64512
        %v1069 = vsel %vm1068, %v1066, inf
        %1070 = vmin.xlane.f32.xlu0 %v1069
        %v1071 = vpop.xlane.xlu0 %1070
        %v1072 = vsel %vm1068, %v1067, inf
        %1073 = vmin.xlane.f32.xlu0 %v1072
        %v1074 = vpop.xlane.xlu0 %1073
        %v1075 = vlaneseq
        %v1076 = vand.u32 %v1075, 127
        %vm1077 = vcmp.eq.f32.partialorder %v1066, %v1071
        %vm1078 = vcmp.eq.f32.partialorder %v1067, %v1074
        %v1079 = vsel %vm1077, %v1076, 8
        %v1080 = vsel %vm1078, %v1076, 8
        %v1081 = vsel %vm1068, %v1079, 2147483647
        %v1082 = vand.u32 %v1081, 65535
        %v1083 = vshra.s32 %v1081, 16
        %v1084 = vcvt.s32.f32 %v1082
        %v1085 = vcvt.s32.f32 %v1083
        %1086 = vmin.xlane.f32.xlu0 %v1085
        %v1087 = vpop.xlane.xlu0 %1086
        %vm1088 = vcmp.eq.f32.partialorder %v1085, %v1087
        %v1089 = vsel %vm1088, %v1084, inf
        %1090 = vmin.xlane.f32.xlu0 %v1089
        %v1091 = vpop.xlane.xlu0 %1090
        %v1092 = vcvt.f32.s32 %v1091
        %v1093 = vcvt.f32.s32 %v1087
        %v1094 = vshll.u32 %v1093, 16
        %v1095 = vadd.s32 %v1094, %v1092
        %v1096 = vsel %vm1068, %v1080, 2147483647
        %v1097 = vand.u32 %v1096, 65535
        %v1098 = vshra.s32 %v1096, 16
        %v1099 = vcvt.s32.f32 %v1097
        %v1100 = vcvt.s32.f32 %v1098
        %1101 = vmin.xlane.f32.xlu0 %v1100
        %v1102 = vpop.xlane.xlu0 %1101
        %vm1103 = vcmp.eq.f32.partialorder %v1100, %v1102
        %v1104 = vsel %vm1103, %v1099, inf
        %1105 = vmin.xlane.f32.xlu0 %v1104
        %v1106 = vpop.xlane.xlu0 %1105
        %v1107 = vcvt.f32.s32 %v1106
        %v1108 = vcvt.f32.s32 %v1102
        %v1109 = vshll.u32 %v1108, 16
        %v1110 = vadd.s32 %v1109, %v1107
        %vm1111 = vcmp.eq.s32.totalorder %v1076, %v1095
        %vm1112 = vcmp.eq.s32.totalorder %v1076, %v1110
        %v1113 = vld [vmem:[%s8] sm:$0xf]
        %v1114 = vsel %vm1111, 1, 0
        %v1115 = vsel %vm1112, 1, 0
        %v1116 = vcvt.s32.f32 %v1114
        %v1117 = vcvt.s32.f32 %v1115
        %v1118 = vpack.c.bf16 %v1117, %v1116
        %v1120 = vsel %vm1068, %v1118, 0
        %vm1122 = vcmask 1043456
        %v1124 = vsel %vm1122, %v1113, 0
        %1126 = vmatpush.bf16.msra.mxu0 0
        %1127 = vmatpush.bf16.msra.mxu0 0
        %1128 = vmatpush.bf16.msra.mxu0 0
        %1129 = vmatpush.bf16.msra.mxu0 0
        %1130 = vmatpush.bf16.msra.mxu0 0
        %1131 = vmatpush.bf16.msra.mxu0 0
        %1132 = vmatpush.bf16.msra.mxu0 0
        %1133 = vmatpush.bf16.msra.mxu0 %v1124
        %1134 = vmatmul.bf16.gmra.mxu0 %v1120
        %v1135 = vpop.f32.mrf.mxu0
        %v1136 = vadd.f32 0.0, %v1135
        %v1137 = vpop.f32.mrf.mxu0
        %v1138 = vadd.f32 0.0, %v1137
        %1139 = vdwg.mxu0
        %v1140 = vld [vmem:[#allocation9] sm:$0xf]
        %v1141 = vld [vmem:[#allocation9 + $0x4] sm:$0xf]
        %v1142 = vld [vmem:[#allocation9 + $0x8] sm:$0xf]
        %v1143 = vld [vmem:[#allocation9 + $0xc] sm:$0xf]
        %v1144 = vpack.c.bf16 %v1138, %v1136
        %v1145 = vld [vmem:[#allocation11] sm:$0xf]
        %v1146 = vld [vmem:[#allocation11 + $0x4] sm:$0xf]
        %v1147 = vld [vmem:[#allocation11 + $0x8] sm:$0xf]
        %v1148 = vld [vmem:[#allocation11 + $0xc] sm:$0xf]
        %v1149 = vpack.c.bf16 %v1136, %v1138
        %v1154 = vunpack.c.l.b16 %v1145
        %v1155 = vunpack.c.l.b16 %v1146
        %v1156 = vunpack.c.l.b16 %v1147
        %v1157 = vunpack.c.l.b16 %v1148
        %v1158 = vpack.c.b16 %v1155, %v1154
        %v1159 = vpack.c.b16 %v1157, %v1156
        %v1163 = vsel %vm964, %v1149, 0
        %1165 = vmatpush.bf16.msra.mxu0 0
        %1166 = vmatpush.bf16.msra.mxu0 0
        %1167 = vmatpush.bf16.msra.mxu0 0
        %1168 = vmatpush.bf16.msra.mxu0 0
        %1169 = vmatpush.bf16.msra.mxu0 0
        %1170 = vmatpush.bf16.msra.mxu0 0
        %1171 = vmatpush.bf16.msra.mxu0 %v1159
        %1172 = vmatpush.bf16.msra.mxu0 %v1158
        %1173 = vmatmul.bf16.gmra.mxu0 %v1163
        %v1174 = vpop.f32.mrf.mxu0
        %v1175 = vadd.f32 0.0, %v1174
        %v1176 = vpop.f32.mrf.mxu0
        %v1177 = vadd.f32 0.0, %v1176
        %1178 = vdwg.mxu0
        %v1183 = vunpack.c.l.b16 %v1140
        %v1184 = vunpack.c.l.b16 %v1141
        %v1185 = vunpack.c.l.b16 %v1142
        %v1186 = vunpack.c.l.b16 %v1143
        %v1187 = vpack.c.b16 %v1184, %v1183
        %v1188 = vpack.c.b16 %v1186, %v1185
        %v1192 = vsel %vm964, %v1144, 0
        %1194 = vmatpush.bf16.msra.mxu0 0
        %1195 = vmatpush.bf16.msra.mxu0 0
        %1196 = vmatpush.bf16.msra.mxu0 0
        %1197 = vmatpush.bf16.msra.mxu0 0
        %1198 = vmatpush.bf16.msra.mxu0 0
        %1199 = vmatpush.bf16.msra.mxu0 0
        %1200 = vmatpush.bf16.msra.mxu0 %v1188
        %1201 = vmatpush.bf16.msra.mxu0 %v1187
        %1202 = vmatmul.bf16.gmra.mxu0 %v1192
        %v1203 = vpop.f32.mrf.mxu0
        %v1204 = vadd.f32 %v1175, %v1203
        %v1205 = vpop.f32.mrf.mxu0
        %v1206 = vadd.f32 %v1177, %v1205
        %1207 = vdwg.mxu0
        %v1208 = vld [vmem:[%s13] sm:$0x1]
        %v1210 = vperm.slane %v1208, 0
        %v1212 = vadd.f32 %v1204, %v1210
        %v1213 = vadd.f32 %v1206, %v1210
        %vm1214 = vcmp.gt.f32.partialorder %v1212, 0.0
        %vm1215 = vcmp.gt.f32.partialorder %v1213, 0.0
        %v1216 = vmul.f32 %v1212, 0.01
        %v1217 = vmul.f32 %v1213, 0.01
        %v1218 = vsel %vm1214, %v1212, %v1216
        %v1219 = vsel %vm1215, %v1213, %v1217
        %v1220 = vld [vmem:[#allocation12] sm:$0xf]
        %v1221 = vld [vmem:[#allocation12 + $0x4] sm:$0xf]
        %v1222 = vld [vmem:[#allocation12 + $0x8] sm:$0xf]
        %v1223 = vld [vmem:[#allocation12 + $0xc] sm:$0xf]
        %v1224 = vpack.c.bf16 %v1219, %v1218
        %v1225 = vld [vmem:[%s15] sm:$0x1]
        %v1227 = vperm.slane %v1225, 0
        %v1233 = vunpack.c.l.b16 %v1220
        %v1234 = vunpack.c.l.b16 %v1221
        %v1235 = vunpack.c.l.b16 %v1222
        %v1236 = vunpack.c.l.b16 %v1223
        %v1237 = vpack.c.b16 %v1234, %v1233
        %v1238 = vpack.c.b16 %v1236, %v1235
        %v1242 = vsel %vm964, %v1224, 0
        %1244 = vmatpush.bf16.msra.mxu0 0
        %1245 = vmatpush.bf16.msra.mxu0 0
        %1246 = vmatpush.bf16.msra.mxu0 0
        %1247 = vmatpush.bf16.msra.mxu0 0
        %1248 = vmatpush.bf16.msra.mxu0 0
        %1249 = vmatpush.bf16.msra.mxu0 0
        %1250 = vmatpush.bf16.msra.mxu0 %v1238
        %1251 = vmatpush.bf16.msra.mxu0 %v1237
        %1252 = vmatmul.bf16.gmra.mxu0 %v1242
        %v1253 = vpop.f32.mrf.mxu0
        %v1254 = vadd.f32 %v1227, %v1253
        %v1255 = vpop.f32.mrf.mxu0
        %v1256 = vadd.f32 %v1227, %v1255
        %1257 = vdwg.mxu0
        %vm1258 = vcmp.gt.f32.partialorder %v1254, 0.0
        %vm1259 = vcmp.gt.f32.partialorder %v1256, 0.0
        %v1260 = vmul.f32 %v1254, 0.01
        %v1261 = vmul.f32 %v1256, 0.01
        %v1262 = vsel %vm1258, %v1254, %v1260
        %v1263 = vsel %vm1259, %v1256, %v1261
        %v1264 = vld [vmem:[#allocation14] sm:$0xf]
        %v1265 = vld [vmem:[#allocation14 + $0x4] sm:$0xf]
        %v1266 = vld [vmem:[#allocation14 + $0x8] sm:$0xf]
        %v1267 = vld [vmem:[#allocation14 + $0xc] sm:$0xf]
        %v1268 = vpack.c.bf16 %v1263, %v1262
        %v1269 = vld [vmem:[%s17] sm:$0x1]
        %v1271 = vperm.slane %v1269, 0
        %v1277 = vunpack.c.l.b16 %v1264
        %v1278 = vunpack.c.l.b16 %v1265
        %v1279 = vunpack.c.l.b16 %v1266
        %v1280 = vunpack.c.l.b16 %v1267
        %v1281 = vpack.c.b16 %v1278, %v1277
        %v1282 = vpack.c.b16 %v1280, %v1279
        %v1286 = vsel %vm964, %v1268, 0
        %1288 = vmatpush.bf16.msra.mxu0 0
        %1289 = vmatpush.bf16.msra.mxu0 0
        %1290 = vmatpush.bf16.msra.mxu0 0
        %1291 = vmatpush.bf16.msra.mxu0 0
        %1292 = vmatpush.bf16.msra.mxu0 0
        %1293 = vmatpush.bf16.msra.mxu0 0
        %1294 = vmatpush.bf16.msra.mxu0 %v1282
        %1295 = vmatpush.bf16.msra.mxu0 %v1281
        %1296 = vmatmul.bf16.gmra.mxu0 %v1286
        %v1297 = vpop.f32.mrf.mxu0
        %v1298 = vadd.f32 %v1271, %v1297
        %v1299 = vpop.f32.mrf.mxu0
        %v1300 = vadd.f32 %v1271, %v1299
        %1301 = vdwg.mxu0
        %vm1302 = vcmp.gt.f32.partialorder %v1298, 0.0
        %vm1303 = vcmp.gt.f32.partialorder %v1300, 0.0
        %v1304 = vmul.f32 %v1298, 0.01
        %v1305 = vmul.f32 %v1300, 0.01
        %v1306 = vsel %vm1302, %v1298, %v1304
        %v1307 = vsel %vm1303, %v1300, %v1305
        %v1308 = vld [vmem:[#allocation15] sm:$0xf]
        %v1309 = vld [vmem:[#allocation15 + $0x4] sm:$0xf]
        %v1310 = vld [vmem:[#allocation15 + $0x8] sm:$0xf]
        %v1311 = vld [vmem:[#allocation15 + $0xc] sm:$0xf]
        %v1312 = vpack.c.bf16 %v1307, %v1306
        %v1313 = vld [vmem:[%s19] sm:$0x1]
        %v1315 = vperm.slane %v1313, 0
        %v1321 = vunpack.c.l.b16 %v1308
        %v1322 = vunpack.c.l.b16 %v1309
        %v1323 = vunpack.c.l.b16 %v1310
        %v1324 = vunpack.c.l.b16 %v1311
        %v1325 = vpack.c.b16 %v1322, %v1321
        %v1326 = vpack.c.b16 %v1324, %v1323
        %v1330 = vsel %vm964, %v1312, 0
        %1332 = vmatpush.bf16.msra.mxu0 0
        %1333 = vmatpush.bf16.msra.mxu0 0
        %1334 = vmatpush.bf16.msra.mxu0 0
        %1335 = vmatpush.bf16.msra.mxu0 0
        %1336 = vmatpush.bf16.msra.mxu0 0
        %1337 = vmatpush.bf16.msra.mxu0 0
        %1338 = vmatpush.bf16.msra.mxu0 %v1326
        %1339 = vmatpush.bf16.msra.mxu0 %v1325
        %1340 = vmatmul.bf16.gmra.mxu0 %v1330
        %v1341 = vpop.f32.mrf.mxu0
        %v1342 = vadd.f32 %v1315, %v1341
        %v1343 = vpop.f32.mrf.mxu0
        %v1344 = vadd.f32 %v1315, %v1343
        %1345 = vdwg.mxu0
        %vm1346 = vcmp.gt.f32.partialorder %v1342, 0.0
        %vm1347 = vcmp.gt.f32.partialorder %v1344, 0.0
        %v1348 = vmul.f32 %v1342, 0.01
        %v1349 = vmul.f32 %v1344, 0.01
        %v1350 = vsel %vm1346, %v1342, %v1348
        %v1351 = vsel %vm1347, %v1344, %v1349
        %v1352 = vld [vmem:[%s20] sm:$0xf]
        %v1353 = vld [vmem:[%s20 + $0x4] sm:$0xf]
        %v1354 = vld [vmem:[%s20 + $0x8] sm:$0xf]
        %v1355 = vld [vmem:[%s20 + $0xc] sm:$0xf]
        %v1356 = vpack.c.bf16 %v1351, %v1350
        %v1357 = vld [vmem:[#allocation2] sm:$0x1]
        %v1359 = vperm.slane %v1357, 0
        %v1365 = vunpack.c.l.b16 %v1352
        %v1366 = vunpack.c.l.b16 %v1353
        %v1367 = vunpack.c.l.b16 %v1354
        %v1368 = vunpack.c.l.b16 %v1355
        %v1369 = vpack.c.b16 %v1366, %v1365
        %v1370 = vpack.c.b16 %v1368, %v1367
        %v1374 = vsel %vm964, %v1356, 0
        %1376 = vmatpush.bf16.msra.mxu0 0
        %1377 = vmatpush.bf16.msra.mxu0 0
        %1378 = vmatpush.bf16.msra.mxu0 0
        %1379 = vmatpush.bf16.msra.mxu0 0
        %1380 = vmatpush.bf16.msra.mxu0 0
        %1381 = vmatpush.bf16.msra.mxu0 0
        %1382 = vmatpush.bf16.msra.mxu0 %v1370
        %1383 = vmatpush.bf16.msra.mxu0 %v1369
        %1384 = vmatmul.bf16.gmra.mxu0 %v1374
        %v1385 = vpop.f32.mrf.mxu0
        %v1386 = vadd.f32 %v1359, %v1385
        %v1387 = vpop.f32.mrf.mxu0
        %v1388 = vadd.f32 %v1359, %v1387
        %1389 = vdwg.mxu0
        %v1390 = vtanh.pop %v1386
        %v1391 = vtanh.pop %v1388
        %v1392 = vsub.f32 %v1390, %v1391
        %v1393 = vmul.f32 %v1392, 0.5
        %1394 = vst.msk [vmem:[%s880] sm:$0xff] %vm964, %v1022
        %1395 = vst.msk [vmem:[%s887] sm:$0xff] %vm964, %v1024
        %v1396 = vcvt.s32.f32 %v1095
        %v1397 = vcvt.s32.f32 %v1110
        %vm1398 = vcmp.eq.s32.totalorder %v1076, 0
        %vm1399 = vcmp.eq.s32.totalorder %v1076, 1
        %vm1400 = vcmp.eq.s32.totalorder %v1076, 2
        %v1401 = vsel %vm1400, %v1397, 0.0
        %v1402 = vsel %vm1399, %v1396, %v1401
        %1404 = vset.pattern.permute.xlu0 0
        %1405 = vperm.xlu0 %1404, %v1393
        %v1406 = vpop.permute.xlu0 %1405
        %v1408 = vsel %vm1398, %v1406, %v1402
        %1409 = vst [vmem:[%s894] sm:$0xff] %v1408
        %s1410 = sand.u32 %s529, 1
        %s1411 = scalar_lea.sflag [#allocation5], %s1410
        %s1412 = sand.u32 %s529, 1
        %s1413 = smul.addr %s1412, 8
        %s1414 = scalar_lea.vmem [#allocation17], %s1413
        %s1415 = sand.u32 %s49, 1
        %s1416 = scalar_lea.sflag [#allocation19], %s1415
        %s1417 = sand.u32 %s555, 1
        %s1418 = smul.addr %s1417, 8
        %s1419 = scalar_lea.vmem [#allocation18], %s1418
        %s1420 = sand.u32 %s49, 1
        %s1421 = scalar_lea.sflag [#allocation19], %s1420
        %s1422 = sand.u32 %s581, 1
        %s1423 = smul.addr %s1422, 8
        %s1424 = scalar_lea.vmem [#allocation20], %s1423
        // Predicated region
        $region141: #{tpu_custom_call.1} parent=107 // pred_check
          %p1425 = pneg %p539
        $region142: #{tpu_custom_call.1} parent=107 // pred_check_branch
          %1427 = sbr.rel (%p1425) target = $region144
        $region143: #{tpu_custom_call.1} parent=107 // pred_region
          %1429 = vsyncadd %s1411, 0
          %s1430 = smul.addr %s49, 8
          %s1431 = scalar_lea.hbm %s22, %s1430
          %s1433 = sshll.u32 %s1414, 4
          %s1434 = int_to_ptr.vmem [resolvable:$true] %s1433
          %s1435 = sshll.u32 %s1431, 4
          %s1436 = int_to_ptr.hbm [resolvable:$true] %s1435
          %1438 = dma.vmem_to_hbm [thread:$0]  %s1434, 128, %s1436, %s1411
        $region144: #{tpu_custom_call.1} parent=107 // pred_fallthru
          _
        // Predicated region
        $region145: #{tpu_custom_call.1} parent=107 // pred_check
          %p1439 = pneg %p565
        $region146: #{tpu_custom_call.1} parent=107 // pred_check_branch
          %1441 = sbr.rel (%p1439) target = $region148
        $region147: #{tpu_custom_call.1} parent=107 // pred_region
          %1443 = vsyncadd %s1416, 0
          %s1444 = smul.addr %s49, 8
          %s1445 = scalar_lea.hbm %s23, %s1444
          %s1447 = sshll.u32 %s1419, 4
          %s1448 = int_to_ptr.vmem [resolvable:$true] %s1447
          %s1449 = sshll.u32 %s1445, 4
          %s1450 = int_to_ptr.hbm [resolvable:$true] %s1449
          %1452 = dma.vmem_to_hbm [thread:$0]  %s1448, 128, %s1450, %s1416
        $region148: #{tpu_custom_call.1} parent=107 // pred_fallthru
          _
        // Predicated region
        $region149: #{tpu_custom_call.1} parent=107 // pred_check
          %p1453 = pneg %p591
        $region150: #{tpu_custom_call.1} parent=107 // pred_check_branch
          %1455 = sbr.rel (%p1453) target = $region152
        $region151: #{tpu_custom_call.1} parent=107 // pred_region
          %1457 = vsyncadd %s1421, 0
          %s1458 = smul.addr %s49, 8
          %s1459 = scalar_lea.hbm %s24, %s1458
          %s1461 = sshll.u32 %s1424, 4
          %s1462 = int_to_ptr.vmem [resolvable:$true] %s1461
          %s1463 = sshll.u32 %s1459, 4
          %s1464 = int_to_ptr.hbm [resolvable:$true] %s1463
          %1466 = dma.vmem_to_hbm [thread:$0]  %s1462, 128, %s1464, %s1421
        $region152: #{tpu_custom_call.1} parent=107 // pred_fallthru
          _
      $region108: #{tpu_custom_call.1} parent=5 // pred_fallthru
        _
      %p1467 = scmp.le.s32.totalorder 2, %s44
      // Predicated region
      $region153: #{tpu_custom_call.1} parent=5 // pred_check
        %p1468 = pneg %p1467
      $region154: #{tpu_custom_call.1} parent=5 // pred_check_branch
        %1470 = sbr.rel (%p1468) target = $region156
      $region155: #{tpu_custom_call.1} parent=5 // pred_region
        %s1471 = ssub.s32 %s44, 2
        // Predicated region
        $region157: #{tpu_custom_call.1} parent=155 // pred_check
          %p1472 = pneg %p545
        $region158: #{tpu_custom_call.1} parent=155 // pred_check_branch
          %1474 = sbr.rel (%p1472) target = $region160
        $region159: #{tpu_custom_call.1} parent=155 // pred_region
          %s1475 = sand.u32 %s530, 1
          %s1476 = scalar_lea.sflag [#allocation5], %s1475
          %s1477 = sand.u32 %s530, 1
          %s1478 = smul.addr %s1477, 8
          %s1479 = scalar_lea.vmem [#allocation17], %s1478
          %1481 = dma.done %s1476, 128
        $region160: #{tpu_custom_call.1} parent=155 // pred_fallthru
          _
        // Predicated region
        $region161: #{tpu_custom_call.1} parent=155 // pred_check
          %p1482 = pneg %p571
        $region162: #{tpu_custom_call.1} parent=155 // pred_check_branch
          %1484 = sbr.rel (%p1482) target = $region164
        $region163: #{tpu_custom_call.1} parent=155 // pred_region
          %s1485 = sand.u32 %s50, 1
          %s1486 = scalar_lea.sflag [#allocation19], %s1485
          %s1487 = sand.u32 %s556, 1
          %s1488 = smul.addr %s1487, 8
          %s1489 = scalar_lea.vmem [#allocation18], %s1488
          %1491 = dma.done %s1486, 128
        $region164: #{tpu_custom_call.1} parent=155 // pred_fallthru
          _
        // Predicated region
        $region165: #{tpu_custom_call.1} parent=155 // pred_check
          %p1492 = pneg %p597
        $region166: #{tpu_custom_call.1} parent=155 // pred_check_branch
          %1494 = sbr.rel (%p1492) target = $region168
        $region167: #{tpu_custom_call.1} parent=155 // pred_region
          %s1495 = sand.u32 %s50, 1
          %s1496 = scalar_lea.sflag [#allocation19], %s1495
          %s1497 = sand.u32 %s582, 1
          %s1498 = smul.addr %s1497, 8
          %s1499 = scalar_lea.vmem [#allocation20], %s1498
          %1501 = dma.done %s1496, 128
        $region168: #{tpu_custom_call.1} parent=155 // pred_fallthru
          _
      $region156: #{tpu_custom_call.1} parent=5 // pred_fallthru
        _
    $region6: #{tpu_custom_call.1} parent=1 // loop_footer
      %s48 = sadd.s32 1, %s44
    $region7: #{tpu_custom_call.1} parent=1 // loop_footer_branch
      %43 = sbr.rel target = $region3
    $region8: #{tpu_custom_call.1} parent=1 // loop_exit
      _
    %1502 = vsyncpa [#allocation4], 1
    %s1503 = scalar_lea.sflag [#allocation4], 1
    %1504 = vsyncpa %s1503, 1
    %1505 = vsyncpa [#allocation7], 1
    %1506 = vsyncpa [#allocation10], 1
    %1507 = vsyncpa [#allocation13], 1
    %1508 = vsyncpa [#allocation16], 1
    %1509 = vsyncpa [#allocation5], 1
    %s1510 = scalar_lea.sflag [#allocation5], 1
    %1511 = vsyncpa %s1510, 1
    %1512 = vsyncpa [#allocation19], 1
    %s1513 = scalar_lea.sflag [#allocation19], 1
    %1514 = vsyncpa %s1513, 1

</llo_original>
